<compile_context>
chip_gen: v6e
topology: v6e:2x2x1
jax: 0.10.0
libtpu: 0.0.40
codegen_flags: <defaults>
</compile_context>

<pallas_src>
import functools
import math

import jax
import jax.numpy as jnp
from jax import lax
from jax.experimental import pallas as pl
from jax.experimental.pallas import tpu as pltpu

CRAZY_NEGATIVE_VALUE = -5000.0
B_AVG = (19 + 9) / 2  # GlobalPool.b_avg = 14.0
EPS = 1e-5


# ----------------------------------------------------------------------------
# Fused ResBlock kernel (one grid step = one batch tile, everything in VMEM)
# ----------------------------------------------------------------------------
def _resblock_kernel(x_ref, mask_ref, w1_ref, b1_ref, w2_ref, b2_ref,
                     wsq_ref, bsq_ref, wex_ref, bex_ref,
                     inv_div_ref, pool_scale_ref,
                     o_ref, xpad_ref, *, bt, H, W, C, mm_dtype):
    HW = H * W
    M = bt * HW

    x = x_ref[...]                                   # (bt, H, W, C)  f32
    m = mask_ref[...]                                # (bt, H, W, 1)  f32
    m_flat = m.reshape(M, 1)

    def conv3x3_bn(src_bhwc, w_ref_local, bias_row):
        # In-kernel halo padding: zero the scratch, write the interior.
        xpad_ref[...] = jnp.zeros_like(xpad_ref)
        xpad_ref[:, 1:H + 1, 1:W + 1, :] = src_bhwc
        xp = xpad_ref[...]                           # (bt, H+2, W+2, C)
        # im2col: 9 taps -> one (M, 9C) operand -> single MXU matmul.
        taps = []
        for dh in range(3):
            for dw in range(3):
                taps.append(xp[:, dh:dh + H, dw:dw + W, :].reshape(M, C))
        cols = jnp.concatenate(taps, axis=1).astype(mm_dtype)       # (M, 9C)
        acc = jnp.dot(cols, w_ref_local[...],
                      preferred_element_type=jnp.float32)           # (M, C)
        # conv(x)*mask -> folded-BN affine -> *mask
        return (acc * m_flat + bias_row) * m_flat

    # ConvBlock1 (use_gamma=False, relu=True)
    out1 = jnp.maximum(conv3x3_bn(x, w1_ref, b1_ref[...]), 0.0)
    # ConvBlock2 (use_gamma=True folded into weights, relu=False)
    out2 = conv3x3_bn(out1.reshape(bt, H, W, C), w2_ref, b2_ref[...])

    # ---- GlobalPool (is_value_head=False) ----
    out2_b = out2.reshape(bt, HW, C)
    inv_div = inv_div_ref[...].reshape(bt, 1)        # 1 / mask_sum_hw
    pool_scale = pool_scale_ref[...].reshape(bt, 1)  # (sqrt(sum) - 14) / 10
    mean = jnp.sum(out2_b, axis=1) * inv_div                         # (bt, C)
    raw = out2 + (1.0 - m_flat) * CRAZY_NEGATIVE_VALUE
    mx = jnp.max(raw.reshape(bt, HW, C), axis=1)                     # (bt, C)
    pooled = jnp.concatenate([mean, mean * pool_scale, mx], axis=1)  # (bt, 3C)

    # ---- squeeze (FC+relu), excite (FC) ----
    hidden = jnp.maximum(
        jnp.dot(pooled.astype(mm_dtype), wsq_ref[...],
                preferred_element_type=jnp.float32) + bsq_ref[...], 0.0)
    se = jnp.dot(hidden.astype(mm_dtype), wex_ref[...],
                 preferred_element_type=jnp.float32) + bex_ref[...]  # (bt, 2C)

    gammas = jax.nn.sigmoid(se[:, :C]).reshape(bt, 1, C)
    betas = se[:, C:].reshape(bt, 1, C)

    out = gammas * out2_b + betas + x.reshape(bt, HW, C)
    out = out * m.reshape(bt, HW, 1)
    out = jnp.maximum(out, 0.0)
    o_ref[...] = out.reshape(bt, H, W, C)


# ----------------------------------------------------------------------------
# NHWC wrapper: folds BN, precomputes pooling scalars, tiles over batch
# ----------------------------------------------------------------------------
def resblock_forward_nhwc(x, mask, mask_sum_hw, mask_sum_hw_sqrt, params, *,
                          batch_tile=8, matmul_dtype=jnp.float32):
    B, H, W, C = x.shape
    S = params["wsq"].shape[1]

    # Fold eval-mode BatchNorm into conv weights/bias (O(C) wrapper work).
    scale1 = 1.0 / jnp.sqrt(params["var1"] + EPS)                  # gamma = 1
    scale2 = params["gamma2"] / jnp.sqrt(params["var2"] + EPS)
    w1 = (params["w1"] * scale1).reshape(9 * C, C).astype(matmul_dtype)
    w2 = (params["w2"] * scale2).reshape(9 * C, C).astype(matmul_dtype)
    b1 = (params["beta1"] - params["mean1"] * scale1).reshape(1, C).astype(jnp.float32)
    b2 = (params["beta2"] - params["mean2"] * scale2).reshape(1, C).astype(jnp.float32)
    wsq = params["wsq"].astype(matmul_dtype)
    bsq = params["bsq"].reshape(1, S).astype(jnp.float32)
    wex = params["wex"].astype(matmul_dtype)
    bex = params["bex"].reshape(1, 2 * C).astype(jnp.float32)

    # Per-sample pooling scalars (no divides in-kernel).
    inv_div = (1.0 / mask_sum_hw).reshape(B, 1, 1).astype(jnp.float32)
    pool_scale = ((mask_sum_hw_sqrt - B_AVG) / 10.0).reshape(B, 1, 1).astype(jnp.float32)

    # Largest batch tile that divides B (use a smaller batch_tile on v7x:
    # 64 MiB VMEM per TensorCore vs 128 MiB on v5e/v6e).
    bt = max(1, min(B, batch_tile))
    while B % bt:
        bt -= 1

    kernel = functools.partial(_resblock_kernel, bt=bt, H=H, W=W, C=C,
                               mm_dtype=matmul_dtype)

    return pl.pallas_call(
        kernel,
        out_shape=jax.ShapeDtypeStruct((B, H, W, C), jnp.float32),
        grid_spec=pltpu.PrefetchScalarGridSpec(
            num_scalar_prefetch=0,
            grid=(B // bt,),
            in_specs=[
                pl.BlockSpec((bt, H, W, C), lambda b: (b, 0, 0, 0)),   # x
                pl.BlockSpec((bt, H, W, 1), lambda b: (b, 0, 0, 0)),   # mask
                pl.BlockSpec((9 * C, C), lambda b: (0, 0)),            # w1'
                pl.BlockSpec((1, C), lambda b: (0, 0)),                # b1'
                pl.BlockSpec((9 * C, C), lambda b: (0, 0)),            # w2'
                pl.BlockSpec((1, C), lambda b: (0, 0)),                # b2'
                pl.BlockSpec((3 * C, S), lambda b: (0, 0)),            # wsq
                pl.BlockSpec((1, S), lambda b: (0, 0)),                # bsq
                pl.BlockSpec((S, 2 * C), lambda b: (0, 0)),            # wex
                pl.BlockSpec((1, 2 * C), lambda b: (0, 0)),            # bex
                pl.BlockSpec((bt, 1, 1), lambda b: (b, 0, 0)),         # 1/div
                pl.BlockSpec((bt, 1, 1), lambda b: (b, 0, 0)),         # b_diff/10
            ],
            out_specs=pl.BlockSpec((bt, H, W, C), lambda b: (b, 0, 0, 0)),
            scratch_shapes=[pltpu.VMEM((bt, H + 2, W + 2, C), jnp.float32)],
        ),
        compiler_params=pltpu.CompilerParams(dimension_semantics=("parallel",)),
    )(x, mask, w1, b1, w2, b2, wsq, bsq, wex, bex, inv_div, pool_scale)


# ----------------------------------------------------------------------------
# Public interface in NCHW (matches the PyTorch module). If the surrounding
# model runs NHWC end-to-end, call resblock_forward_nhwc directly and skip
# the transposes (they cost a full HBM round-trip per block).
# ----------------------------------------------------------------------------
def resblock_forward(x_nchw, mask_nchw, mask_sum_hw, mask_sum_hw_sqrt, params,
                     **kwargs):
    x = jnp.transpose(x_nchw, (0, 2, 3, 1))       # NCHW -> NHWC
    mask = jnp.transpose(mask_nchw, (0, 2, 3, 1))
    out = resblock_forward_nhwc(x, mask, mask_sum_hw, mask_sum_hw_sqrt,
                                params, **kwargs)
    return jnp.transpose(out, (0, 3, 1, 2))       # NHWC -> NCHW


# ----------------------------------------------------------------------------
# Pure-JAX reference (mirrors the PyTorch eval-mode forward, in NCHW)
# ----------------------------------------------------------------------------
def _ref_conv_block(x, mask, w_oihw, mean, var, gamma, beta, relu):
    y = lax.conv_general_dilated(x, w_oihw, window_strides=(1, 1),
                                 padding=((1, 1), (1, 1)),
                                 dimension_numbers=("NCHW", "OIHW", "NCHW"))
    y = y * mask
    std = jnp.sqrt(var + EPS)
    y = (y - mean[None, :, None, None]) / std[None, :, None, None]
    if gamma is not None:
        y = y * gamma[None, :, None, None]
    y = y + beta[None, :, None, None]
    y = y * mask
    return jnp.maximum(y, 0.0) if relu else y


def ref_resblock(x, mask, mask_sum_hw, mask_sum_hw_sqrt, p):
    identity = x
    w1_oihw = jnp.transpose(p["w1"], (3, 2, 0, 1))
    w2_oihw = jnp.transpose(p["w2"], (3, 2, 0, 1))
    out = _ref_conv_block(x, mask, w1_oihw, p["mean1"], p["var1"], None,
                          p["beta1"], relu=True)
    out = _ref_conv_block(out, mask, w2_oihw, p["mean2"], p["var2"],
                          p["gamma2"], p["beta2"], relu=False)
    b, c, h, w = out.shape
    div = mask_sum_hw.reshape(-1, 1)
    div_sqrt = mask_sum_hw_sqrt.reshape(-1, 1)
    mean = jnp.sum(out, axis=(2, 3)) / div
    b_diff = div_sqrt - B_AVG
    raw = out + (1.0 - mask) * CRAZY_NEGATIVE_VALUE
    mx = jnp.max(raw.reshape(b, c, h * w), axis=2)
    pooled = jnp.concatenate([mean, mean * (b_diff / 10.0), mx], axis=1)
    hidden = jnp.maximum(pooled @ p["wsq"] + p["bsq"], 0.0)
    se = hidden @ p["wex"] + p["bex"]
    gammas = se[:, :c].reshape(b, c, 1, 1)
    betas = se[:, c:].reshape(b, c, 1, 1)
    out = jax.nn.sigmoid(gammas) * out + betas + identity
    out = out * mask
    return jnp.maximum(out, 0.0)


# ----------------------------------------------------------------------------
if __name__ == "__main__":
    B, C, H, W = 2, 8, 8, 8
    SE_SIZE = 8

    key = jax.random.PRNGKey(0)
    ks = jax.random.split(key, 16)

    conv_std = math.sqrt(2.0 / (9 * C + 9 * C))
    params = dict(
        w1=conv_std * jax.random.normal(ks[0], (3, 3, C, C), jnp.float32),
        w2=conv_std * jax.random.normal(ks[1], (3, 3, C, C), jnp.float32),
        mean1=0.1 * jax.random.normal(ks[2], (C,), jnp.float32),
        var1=1.0 + 0.1 * jax.random.uniform(ks[3], (C,), jnp.float32),
        beta1=0.1 * jax.random.normal(ks[4], (C,), jnp.float32),
        mean2=0.1 * jax.random.normal(ks[5], (C,), jnp.float32),
        var2=1.0 + 0.1 * jax.random.uniform(ks[6], (C,), jnp.float32),
        gamma2=1.0 + 0.1 * jax.random.normal(ks[7], (C,), jnp.float32),
        beta2=0.1 * jax.random.normal(ks[8], (C,), jnp.float32),
        wsq=math.sqrt(2.0 / (3 * C + SE_SIZE)) *
            jax.random.normal(ks[9], (3 * C, SE_SIZE), jnp.float32),
        bsq=jnp.zeros((SE_SIZE,), jnp.float32),
        wex=math.sqrt(2.0 / (SE_SIZE + 2 * C)) *
            jax.random.normal(ks[10], (SE_SIZE, 2 * C), jnp.float32),
        bex=jnp.zeros((2 * C,), jnp.float32),
    )

    x = jax.random.normal(ks[11], (B, C, H, W), jnp.float32)
    mask = (jax.random.uniform(ks[12], (B, 1, H, W)) < 0.85).astype(jnp.float32)
    mask = mask.at[:, :, 0, 0].set(1.0)  # keep at least one live square
    mask_sum_hw = jnp.sum(mask, axis=(1, 2, 3))
    mask_sum_hw_sqrt = jnp.sqrt(mask_sum_hw)

    ref = jax.block_until_ready(
        ref_resblock(x, mask, mask_sum_hw, mask_sum_hw_sqrt, params))

    # f32 MXU path (exact-ish): tight tolerance.
    out = jax.block_until_ready(
        resblock_forward(x, mask, mask_sum_hw, mask_sum_hw_sqrt, params))
    assert out.shape == (B, C, H, W)
    assert jnp.allclose(out, ref, rtol=1e-3, atol=1e-3), \
        f"f32 max abs err = {jnp.max(jnp.abs(out - ref))}"

    # bf16 MXU-input path (v6e/v7x recommendation), f32 accumulation/epilogue.
    out_bf16 = jax.block_until_ready(
        resblock_forward(x, mask, mask_sum_hw, mask_sum_hw_sqrt, params,
                         matmul_dtype=jnp.bfloat16))
    assert jnp.allclose(out_bf16, ref, rtol=5e-2, atol=5e-2), \
        f"bf16 max abs err = {jnp.max(jnp.abs(out_bf16 - ref))}"

    print("KERNEL_OK")
</pallas_src>

<mosaic_0001>
module attributes {stable_mosaic.version = 11 : i64} {
  func.func @_resblock_kernel(%arg0: i32, %arg1: memref<2x8x8x8xf32, #tpu.memory_space<vmem>>, %arg2: memref<2x8x8x1xf32, #tpu.memory_space<vmem>>, %arg3: memref<72x8xf32, #tpu.memory_space<vmem>>, %arg4: memref<1x8xf32, #tpu.memory_space<vmem>>, %arg5: memref<72x8xf32, #tpu.memory_space<vmem>>, %arg6: memref<1x8xf32, #tpu.memory_space<vmem>>, %arg7: memref<24x8xf32, #tpu.memory_space<vmem>>, %arg8: memref<1x8xf32, #tpu.memory_space<vmem>>, %arg9: memref<8x16xf32, #tpu.memory_space<vmem>>, %arg10: memref<1x16xf32, #tpu.memory_space<vmem>>, %arg11: memref<2x1x1xf32, #tpu.memory_space<vmem>>, %arg12: memref<2x1x1xf32, #tpu.memory_space<vmem>>, %arg13: memref<2x8x8x8xf32, #tpu.memory_space<vmem>>, %arg14: memref<2x10x10x8xf32, #tpu.memory_space<vmem>>) attributes {dimension_semantics = [#tpu.dimension_semantics<parallel>], iteration_bounds = array<i64: 1>, scalar_prefetch = 0 : i64, scratch_operands = 1 : i64, tpu.core_type = #tpu.core_type<tc>, window_params = [{transform_indices = @transform_0, window_bounds = array<i64: 2, 8, 8, 8>}, {transform_indices = @transform_1, window_bounds = array<i64: 2, 8, 8, 1>}, {pipeline_mode = #tpu.pipeline_mode<synchronous>, transform_indices = @transform_2, window_bounds = array<i64: 72, 8>}, {pipeline_mode = #tpu.pipeline_mode<synchronous>, transform_indices = @transform_3, window_bounds = array<i64: 1, 8>}, {pipeline_mode = #tpu.pipeline_mode<synchronous>, transform_indices = @transform_4, window_bounds = array<i64: 72, 8>}, {pipeline_mode = #tpu.pipeline_mode<synchronous>, transform_indices = @transform_5, window_bounds = array<i64: 1, 8>}, {pipeline_mode = #tpu.pipeline_mode<synchronous>, transform_indices = @transform_6, window_bounds = array<i64: 24, 8>}, {pipeline_mode = #tpu.pipeline_mode<synchronous>, transform_indices = @transform_7, window_bounds = array<i64: 1, 8>}, {pipeline_mode = #tpu.pipeline_mode<synchronous>, transform_indices = @transform_8, window_bounds = array<i64: 8, 16>}, {pipeline_mode = #tpu.pipeline_mode<synchronous>, transform_indices = @transform_9, window_bounds = array<i64: 1, 16>}, {transform_indices = @transform_10, window_bounds = array<i64: 2, 1, 1>}, {transform_indices = @transform_11, window_bounds = array<i64: 2, 1, 1>}, {transform_indices = @transform_12, window_bounds = array<i64: 2, 8, 8, 8>}]} {
    %c0 = arith.constant 0 : index
    %c0_0 = arith.constant 0 : index
    %c0_1 = arith.constant 0 : index
    %c0_2 = arith.constant 0 : index
    %0 = vector.load %arg1[%c0, %c0_0, %c0_1, %c0_2] : memref<2x8x8x8xf32, #tpu.memory_space<vmem>>, vector<2x8x8x8xf32>
    %c0_3 = arith.constant 0 : index
    %c0_4 = arith.constant 0 : index
    %c0_5 = arith.constant 0 : index
    %c0_6 = arith.constant 0 : index
    %1 = vector.load %arg2[%c0_3, %c0_4, %c0_5, %c0_6] : memref<2x8x8x1xf32, #tpu.memory_space<vmem>>, vector<2x8x8x1xf32>
    %2 = vector.shape_cast %1 : vector<2x8x8x1xf32> to vector<128x1xf32>
    %c0_7 = arith.constant 0 : index
    %c0_8 = arith.constant 0 : index
    %3 = vector.load %arg4[%c0_7, %c0_8] : memref<1x8xf32, #tpu.memory_space<vmem>>, vector<1x8xf32>
    %cst = arith.constant 0.000000e+00 : f32
    %4 = vector.broadcast %cst : f32 to vector<2x10x10x8xf32>
    %c0_9 = arith.constant 0 : index
    %c0_10 = arith.constant 0 : index
    %c0_11 = arith.constant 0 : index
    %c0_12 = arith.constant 0 : index
    %5 = vector.load %arg14[%c0_9, %c0_10, %c0_11, %c0_12] : memref<2x10x10x8xf32, #tpu.memory_space<vmem>>, vector<2x10x10x8xf32>
    tpu.vector_store %arg14[%c0_9, %c0_10, %c0_11, %c0_12], %4 {strides = array<i32>} : memref<2x10x10x8xf32, #tpu.memory_space<vmem>>, vector<2x10x10x8xf32>,
    %c0_13 = arith.constant 0 : index
    %c1 = arith.constant 1 : index
    %c1_14 = arith.constant 1 : index
    %c0_15 = arith.constant 0 : index
    %6 = vector.load %arg14[%c0_13, %c1, %c1_14, %c0_15] : memref<2x10x10x8xf32, #tpu.memory_space<vmem>>, vector<2x8x8x8xf32>
    tpu.vector_store %arg14[%c0_13, %c1, %c1_14, %c0_15], %0 {strides = array<i32>} : memref<2x10x10x8xf32, #tpu.memory_space<vmem>>, vector<2x8x8x8xf32>,
    %c0_16 = arith.constant 0 : index
    %c0_17 = arith.constant 0 : index
    %c0_18 = arith.constant 0 : index
    %c0_19 = arith.constant 0 : index
    %7 = vector.load %arg14[%c0_16, %c0_17, %c0_18, %c0_19] : memref<2x10x10x8xf32, #tpu.memory_space<vmem>>, vector<2x10x10x8xf32>
    %8 = vector.extract_strided_slice %7 {offsets = [0, 0, 0, 0], sizes = [2, 8, 8, 8], strides = [1, 1, 1, 1]} : vector<2x10x10x8xf32> to vector<2x8x8x8xf32>
    %9 = vector.shape_cast %8 : vector<2x8x8x8xf32> to vector<128x8xf32>
    %10 = vector.extract_strided_slice %7 {offsets = [0, 0, 1, 0], sizes = [2, 8, 8, 8], strides = [1, 1, 1, 1]} : vector<2x10x10x8xf32> to vector<2x8x8x8xf32>
    %11 = vector.shape_cast %10 : vector<2x8x8x8xf32> to vector<128x8xf32>
    %12 = vector.extract_strided_slice %7 {offsets = [0, 0, 2, 0], sizes = [2, 8, 8, 8], strides = [1, 1, 1, 1]} : vector<2x10x10x8xf32> to vector<2x8x8x8xf32>
    %13 = vector.shape_cast %12 : vector<2x8x8x8xf32> to vector<128x8xf32>
    %14 = vector.extract_strided_slice %7 {offsets = [0, 1, 0, 0], sizes = [2, 8, 8, 8], strides = [1, 1, 1, 1]} : vector<2x10x10x8xf32> to vector<2x8x8x8xf32>
    %15 = vector.shape_cast %14 : vector<2x8x8x8xf32> to vector<128x8xf32>
    %16 = vector.extract_strided_slice %7 {offsets = [0, 1, 1, 0], sizes = [2, 8, 8, 8], strides = [1, 1, 1, 1]} : vector<2x10x10x8xf32> to vector<2x8x8x8xf32>
    %17 = vector.shape_cast %16 : vector<2x8x8x8xf32> to vector<128x8xf32>
    %18 = vector.extract_strided_slice %7 {offsets = [0, 1, 2, 0], sizes = [2, 8, 8, 8], strides = [1, 1, 1, 1]} : vector<2x10x10x8xf32> to vector<2x8x8x8xf32>
    %19 = vector.shape_cast %18 : vector<2x8x8x8xf32> to vector<128x8xf32>
    %20 = vector.extract_strided_slice %7 {offsets = [0, 2, 0, 0], sizes = [2, 8, 8, 8], strides = [1, 1, 1, 1]} : vector<2x10x10x8xf32> to vector<2x8x8x8xf32>
    %21 = vector.shape_cast %20 : vector<2x8x8x8xf32> to vector<128x8xf32>
    %22 = vector.extract_strided_slice %7 {offsets = [0, 2, 1, 0], sizes = [2, 8, 8, 8], strides = [1, 1, 1, 1]} : vector<2x10x10x8xf32> to vector<2x8x8x8xf32>
    %23 = vector.shape_cast %22 : vector<2x8x8x8xf32> to vector<128x8xf32>
    %24 = vector.extract_strided_slice %7 {offsets = [0, 2, 2, 0], sizes = [2, 8, 8, 8], strides = [1, 1, 1, 1]} : vector<2x10x10x8xf32> to vector<2x8x8x8xf32>
    %25 = vector.shape_cast %24 : vector<2x8x8x8xf32> to vector<128x8xf32>
    %26 = tpu.concatenate %9, %11, %13, %15, %17, %19, %21, %23, %25 in 1 : vector<128x8xf32>, vector<128x8xf32>, vector<128x8xf32>, vector<128x8xf32>, vector<128x8xf32>, vector<128x8xf32>, vector<128x8xf32>, vector<128x8xf32>, vector<128x8xf32> -> vector<128x72xf32>
    %c0_20 = arith.constant 0 : index
    %c0_21 = arith.constant 0 : index
    %27 = vector.load %arg3[%c0_20, %c0_21] : memref<72x8xf32, #tpu.memory_space<vmem>>, vector<72x8xf32>
    %cst_22 = arith.constant dense<0.000000e+00> : vector<128x8xf32>
    %28 = tpu.matmul %26, %27, %cst_22 {dimension_numbers = #tpu.dot_dimension_numbers<[1], [0], [0], [1], [0, 0, 1, 1], [], []>} : vector<128x72xf32>, vector<72x8xf32>, vector<128x8xf32> -> vector<128x8xf32>
    %29 = vector.broadcast %2 : vector<128x1xf32> to vector<128x8xf32>
    %30 = arith.mulf %28, %29 : vector<128x8xf32>
    %31 = vector.broadcast %3 : vector<1x8xf32> to vector<128x8xf32>
    %32 = arith.addf %30, %31 : vector<128x8xf32>
    %33 = vector.broadcast %2 : vector<128x1xf32> to vector<128x8xf32>
    %34 = arith.mulf %32, %33 : vector<128x8xf32>
    %cst_23 = arith.constant 0.000000e+00 : f32
    %35 = vector.broadcast %cst_23 : f32 to vector<128x8xf32>
    %36 = arith.maximumf %34, %35 : vector<128x8xf32>
    %37 = vector.shape_cast %36 : vector<128x8xf32> to vector<2x8x8x8xf32>
    %c0_24 = arith.constant 0 : index
    %c0_25 = arith.constant 0 : index
    %38 = vector.load %arg6[%c0_24, %c0_25] : memref<1x8xf32, #tpu.memory_space<vmem>>, vector<1x8xf32>
    %cst_26 = arith.constant 0.000000e+00 : f32
    %39 = vector.broadcast %cst_26 : f32 to vector<2x10x10x8xf32>
    %c0_27 = arith.constant 0 : index
    %c0_28 = arith.constant 0 : index
    %c0_29 = arith.constant 0 : index
    %c0_30 = arith.constant 0 : index
    %40 = vector.load %arg14[%c0_27, %c0_28, %c0_29, %c0_30] : memref<2x10x10x8xf32, #tpu.memory_space<vmem>>, vector<2x10x10x8xf32>
    tpu.vector_store %arg14[%c0_27, %c0_28, %c0_29, %c0_30], %39 {strides = array<i32>} : memref<2x10x10x8xf32, #tpu.memory_space<vmem>>, vector<2x10x10x8xf32>,
    %c0_31 = arith.constant 0 : index
    %c1_32 = arith.constant 1 : index
    %c1_33 = arith.constant 1 : index
    %c0_34 = arith.constant 0 : index
    %41 = vector.load %arg14[%c0_31, %c1_32, %c1_33, %c0_34] : memref<2x10x10x8xf32, #tpu.memory_space<vmem>>, vector<2x8x8x8xf32>
    tpu.vector_store %arg14[%c0_31, %c1_32, %c1_33, %c0_34], %37 {strides = array<i32>} : memref<2x10x10x8xf32, #tpu.memory_space<vmem>>, vector<2x8x8x8xf32>,
    %c0_35 = arith.constant 0 : index
    %c0_36 = arith.constant 0 : index
    %c0_37 = arith.constant 0 : index
    %c0_38 = arith.constant 0 : index
    %42 = vector.load %arg14[%c0_35, %c0_36, %c0_37, %c0_38] : memref<2x10x10x8xf32, #tpu.memory_space<vmem>>, vector<2x10x10x8xf32>
    %43 = vector.extract_strided_slice %42 {offsets = [0, 0, 0, 0], sizes = [2, 8, 8, 8], strides = [1, 1, 1, 1]} : vector<2x10x10x8xf32> to vector<2x8x8x8xf32>
    %44 = vector.shape_cast %43 : vector<2x8x8x8xf32> to vector<128x8xf32>
    %45 = vector.extract_strided_slice %42 {offsets = [0, 0, 1, 0], sizes = [2, 8, 8, 8], strides = [1, 1, 1, 1]} : vector<2x10x10x8xf32> to vector<2x8x8x8xf32>
    %46 = vector.shape_cast %45 : vector<2x8x8x8xf32> to vector<128x8xf32>
    %47 = vector.extract_strided_slice %42 {offsets = [0, 0, 2, 0], sizes = [2, 8, 8, 8], strides = [1, 1, 1, 1]} : vector<2x10x10x8xf32> to vector<2x8x8x8xf32>
    %48 = vector.shape_cast %47 : vector<2x8x8x8xf32> to vector<128x8xf32>
    %49 = vector.extract_strided_slice %42 {offsets = [0, 1, 0, 0], sizes = [2, 8, 8, 8], strides = [1, 1, 1, 1]} : vector<2x10x10x8xf32> to vector<2x8x8x8xf32>
    %50 = vector.shape_cast %49 : vector<2x8x8x8xf32> to vector<128x8xf32>
    %51 = vector.extract_strided_slice %42 {offsets = [0, 1, 1, 0], sizes = [2, 8, 8, 8], strides = [1, 1, 1, 1]} : vector<2x10x10x8xf32> to vector<2x8x8x8xf32>
    %52 = vector.shape_cast %51 : vector<2x8x8x8xf32> to vector<128x8xf32>
    %53 = vector.extract_strided_slice %42 {offsets = [0, 1, 2, 0], sizes = [2, 8, 8, 8], strides = [1, 1, 1, 1]} : vector<2x10x10x8xf32> to vector<2x8x8x8xf32>
    %54 = vector.shape_cast %53 : vector<2x8x8x8xf32> to vector<128x8xf32>
    %55 = vector.extract_strided_slice %42 {offsets = [0, 2, 0, 0], sizes = [2, 8, 8, 8], strides = [1, 1, 1, 1]} : vector<2x10x10x8xf32> to vector<2x8x8x8xf32>
    %56 = vector.shape_cast %55 : vector<2x8x8x8xf32> to vector<128x8xf32>
    %57 = vector.extract_strided_slice %42 {offsets = [0, 2, 1, 0], sizes = [2, 8, 8, 8], strides = [1, 1, 1, 1]} : vector<2x10x10x8xf32> to vector<2x8x8x8xf32>
    %58 = vector.shape_cast %57 : vector<2x8x8x8xf32> to vector<128x8xf32>
    %59 = vector.extract_strided_slice %42 {offsets = [0, 2, 2, 0], sizes = [2, 8, 8, 8], strides = [1, 1, 1, 1]} : vector<2x10x10x8xf32> to vector<2x8x8x8xf32>
    %60 = vector.shape_cast %59 : vector<2x8x8x8xf32> to vector<128x8xf32>
    %61 = tpu.concatenate %44, %46, %48, %50, %52, %54, %56, %58, %60 in 1 : vector<128x8xf32>, vector<128x8xf32>, vector<128x8xf32>, vector<128x8xf32>, vector<128x8xf32>, vector<128x8xf32>, vector<128x8xf32>, vector<128x8xf32>, vector<128x8xf32> -> vector<128x72xf32>
    %c0_39 = arith.constant 0 : index
    %c0_40 = arith.constant 0 : index
    %62 = vector.load %arg5[%c0_39, %c0_40] : memref<72x8xf32, #tpu.memory_space<vmem>>, vector<72x8xf32>
    %cst_41 = arith.constant dense<0.000000e+00> : vector<128x8xf32>
    %63 = tpu.matmul %61, %62, %cst_41 {dimension_numbers = #tpu.dot_dimension_numbers<[1], [0], [0], [1], [0, 0, 1, 1], [], []>} : vector<128x72xf32>, vector<72x8xf32>, vector<128x8xf32> -> vector<128x8xf32>
    %64 = vector.broadcast %2 : vector<128x1xf32> to vector<128x8xf32>
    %65 = arith.mulf %63, %64 : vector<128x8xf32>
    %66 = vector.broadcast %38 : vector<1x8xf32> to vector<128x8xf32>
    %67 = arith.addf %65, %66 : vector<128x8xf32>
    %68 = vector.broadcast %2 : vector<128x1xf32> to vector<128x8xf32>
    %69 = arith.mulf %67, %68 : vector<128x8xf32>
    %70 = vector.shape_cast %69 : vector<128x8xf32> to vector<2x64x8xf32>
    %c0_42 = arith.constant 0 : index
    %c0_43 = arith.constant 0 : index
    %c0_44 = arith.constant 0 : index
    %71 = vector.load %arg11[%c0_42, %c0_43, %c0_44] : memref<2x1x1xf32, #tpu.memory_space<vmem>>, vector<2x1x1xf32>
    %72 = vector.shape_cast %71 : vector<2x1x1xf32> to vector<2x1xf32>
    %c0_45 = arith.constant 0 : index
    %c0_46 = arith.constant 0 : index
    %c0_47 = arith.constant 0 : index
    %73 = vector.load %arg12[%c0_45, %c0_46, %c0_47] : memref<2x1x1xf32, #tpu.memory_space<vmem>>, vector<2x1x1xf32>
    %74 = vector.shape_cast %73 : vector<2x1x1xf32> to vector<2x1xf32>
    %cst_48 = arith.constant dense<0.000000e+00> : vector<2x8xf32>
    %75 = vector.multi_reduction <add>, %70, %cst_48 [1] : vector<2x64x8xf32> to vector<2x8xf32>
    %76 = vector.broadcast %72 : vector<2x1xf32> to vector<2x8xf32>
    %77 = arith.mulf %75, %76 : vector<2x8xf32>
    %cst_49 = arith.constant 1.000000e+00 : f32
    %78 = vector.broadcast %cst_49 : f32 to vector<128x1xf32>
    %79 = arith.subf %78, %2 : vector<128x1xf32>
    %cst_50 = arith.constant -5.000000e+03 : f32
    %80 = vector.broadcast %cst_50 : f32 to vector<128x1xf32>
    %81 = arith.mulf %79, %80 : vector<128x1xf32>
    %82 = vector.broadcast %81 : vector<128x1xf32> to vector<128x8xf32>
    %83 = arith.addf %69, %82 : vector<128x8xf32>
    %84 = vector.shape_cast %83 : vector<128x8xf32> to vector<2x64x8xf32>
    %cst_51 = arith.constant dense<0xFF800000> : vector<2x8xf32>
    %85 = vector.multi_reduction <maximumf>, %84, %cst_51 [1] : vector<2x64x8xf32> to vector<2x8xf32>
    %86 = vector.broadcast %74 : vector<2x1xf32> to vector<2x8xf32>
    %87 = arith.mulf %77, %86 : vector<2x8xf32>
    %88 = tpu.concatenate %77, %87, %85 in 1 : vector<2x8xf32>, vector<2x8xf32>, vector<2x8xf32> -> vector<2x24xf32>
    %c0_52 = arith.constant 0 : index
    %c0_53 = arith.constant 0 : index
    %89 = vector.load %arg7[%c0_52, %c0_53] : memref<24x8xf32, #tpu.memory_space<vmem>>, vector<24x8xf32>
    %cst_54 = arith.constant dense<0.000000e+00> : vector<2x8xf32>
    %90 = tpu.matmul %88, %89, %cst_54 {dimension_numbers = #tpu.dot_dimension_numbers<[1], [0], [0], [1], [0, 0, 1, 1], [], []>} : vector<2x24xf32>, vector<24x8xf32>, vector<2x8xf32> -> vector<2x8xf32>
    %c0_55 = arith.constant 0 : index
    %c0_56 = arith.constant 0 : index
    %91 = vector.load %arg8[%c0_55, %c0_56] : memref<1x8xf32, #tpu.memory_space<vmem>>, vector<1x8xf32>
    %92 = vector.broadcast %91 : vector<1x8xf32> to vector<2x8xf32>
    %93 = arith.addf %90, %92 : vector<2x8xf32>
    %cst_57 = arith.constant 0.000000e+00 : f32
    %94 = vector.broadcast %cst_57 : f32 to vector<2x8xf32>
    %95 = arith.maximumf %93, %94 : vector<2x8xf32>
    %c0_58 = arith.constant 0 : index
    %c0_59 = arith.constant 0 : index
    %96 = vector.load %arg9[%c0_58, %c0_59] : memref<8x16xf32, #tpu.memory_space<vmem>>, vector<8x16xf32>
    %cst_60 = arith.constant dense<0.000000e+00> : vector<2x16xf32>
    %97 = tpu.matmul %95, %96, %cst_60 {dimension_numbers = #tpu.dot_dimension_numbers<[1], [0], [0], [1], [0, 0, 1, 1], [], []>} : vector<2x8xf32>, vector<8x16xf32>, vector<2x16xf32> -> vector<2x16xf32>
    %c0_61 = arith.constant 0 : index
    %c0_62 = arith.constant 0 : index
    %98 = vector.load %arg10[%c0_61, %c0_62] : memref<1x16xf32, #tpu.memory_space<vmem>>, vector<1x16xf32>
    %99 = vector.broadcast %98 : vector<1x16xf32> to vector<2x16xf32>
    %100 = arith.addf %97, %99 : vector<2x16xf32>
    %101 = vector.extract_strided_slice %100 {offsets = [0, 0], sizes = [2, 8], strides = [1, 1]} : vector<2x16xf32> to vector<2x8xf32>
    %102 = arith.negf %101 : vector<2x8xf32>
    %103 = math.exp %102 : vector<2x8xf32>
    %cst_63 = arith.constant 1.000000e+00 : f32
    %104 = vector.broadcast %cst_63 : f32 to vector<2x8xf32>
    %105 = arith.addf %104, %103 : vector<2x8xf32>
    %106 = arith.divf %104, %105 : vector<2x8xf32>
    %107 = vector.shape_cast %106 : vector<2x8xf32> to vector<2x1x8xf32>
    %108 = vector.extract_strided_slice %100 {offsets = [0, 8], sizes = [2, 8], strides = [1, 1]} : vector<2x16xf32> to vector<2x8xf32>
    %109 = vector.shape_cast %108 : vector<2x8xf32> to vector<2x1x8xf32>
    %110 = vector.broadcast %107 : vector<2x1x8xf32> to vector<2x64x8xf32>
    %111 = arith.mulf %110, %70 : vector<2x64x8xf32>
    %112 = vector.broadcast %109 : vector<2x1x8xf32> to vector<2x64x8xf32>
    %113 = arith.addf %111, %112 : vector<2x64x8xf32>
    %114 = vector.shape_cast %0 : vector<2x8x8x8xf32> to vector<2x64x8xf32>
    %115 = arith.addf %113, %114 : vector<2x64x8xf32>
    %116 = vector.shape_cast %1 : vector<2x8x8x1xf32> to vector<2x64x1xf32>
    %117 = vector.broadcast %116 : vector<2x64x1xf32> to vector<2x64x8xf32>
    %118 = arith.mulf %115, %117 : vector<2x64x8xf32>
    %cst_64 = arith.constant 0.000000e+00 : f32
    %119 = vector.broadcast %cst_64 : f32 to vector<2x64x8xf32>
    %120 = arith.maximumf %118, %119 : vector<2x64x8xf32>
    %121 = vector.shape_cast %120 : vector<2x64x8xf32> to vector<2x8x8x8xf32>
    %c0_65 = arith.constant 0 : index
    %c0_66 = arith.constant 0 : index
    %c0_67 = arith.constant 0 : index
    %c0_68 = arith.constant 0 : index
    %122 = vector.load %arg13[%c0_65, %c0_66, %c0_67, %c0_68] : memref<2x8x8x8xf32, #tpu.memory_space<vmem>>, vector<2x8x8x8xf32>
    tpu.vector_store %arg13[%c0_65, %c0_66, %c0_67, %c0_68], %121 {strides = array<i32>} : memref<2x8x8x8xf32, #tpu.memory_space<vmem>>, vector<2x8x8x8xf32>,
    return
  }
  func.func @transform_0(%arg0: i32) -> (i32, i32, i32, i32) {
    %c0_i32 = arith.constant 0 : i32
    %c0_i32_0 = arith.constant 0 : i32
    %c0_i32_1 = arith.constant 0 : i32
    %c0_i32_2 = arith.constant 0 : i32
    return %arg0, %c0_i32, %c0_i32_0, %c0_i32_1 : i32, i32, i32, i32
  }
  func.func @transform_1(%arg0: i32) -> (i32, i32, i32, i32) {
    %c0_i32 = arith.constant 0 : i32
    %c0_i32_0 = arith.constant 0 : i32
    %c0_i32_1 = arith.constant 0 : i32
    %c0_i32_2 = arith.constant 0 : i32
    return %arg0, %c0_i32, %c0_i32_0, %c0_i32_1 : i32, i32, i32, i32
  }
  func.func @transform_2(%arg0: i32) -> (i32, i32) {
    %c0_i32 = arith.constant 0 : i32
    %c0_i32_0 = arith.constant 0 : i32
    %c0_i32_1 = arith.constant 0 : i32
    return %c0_i32, %c0_i32_0 : i32, i32
  }
  func.func @transform_3(%arg0: i32) -> (i32, i32) {
    %c0_i32 = arith.constant 0 : i32
    %c0_i32_0 = arith.constant 0 : i32
    %c0_i32_1 = arith.constant 0 : i32
    return %c0_i32, %c0_i32_0 : i32, i32
  }
  func.func @transform_4(%arg0: i32) -> (i32, i32) {
    %c0_i32 = arith.constant 0 : i32
    %c0_i32_0 = arith.constant 0 : i32
    %c0_i32_1 = arith.constant 0 : i32
    return %c0_i32, %c0_i32_0 : i32, i32
  }
  func.func @transform_5(%arg0: i32) -> (i32, i32) {
    %c0_i32 = arith.constant 0 : i32
    %c0_i32_0 = arith.constant 0 : i32
    %c0_i32_1 = arith.constant 0 : i32
    return %c0_i32, %c0_i32_0 : i32, i32
  }
  func.func @transform_6(%arg0: i32) -> (i32, i32) {
    %c0_i32 = arith.constant 0 : i32
    %c0_i32_0 = arith.constant 0 : i32
    %c0_i32_1 = arith.constant 0 : i32
    return %c0_i32, %c0_i32_0 : i32, i32
  }
  func.func @transform_7(%arg0: i32) -> (i32, i32) {
    %c0_i32 = arith.constant 0 : i32
    %c0_i32_0 = arith.constant 0 : i32
    %c0_i32_1 = arith.constant 0 : i32
    return %c0_i32, %c0_i32_0 : i32, i32
  }
  func.func @transform_8(%arg0: i32) -> (i32, i32) {
    %c0_i32 = arith.constant 0 : i32
    %c0_i32_0 = arith.constant 0 : i32
    %c0_i32_1 = arith.constant 0 : i32
    return %c0_i32, %c0_i32_0 : i32, i32
  }
  func.func @transform_9(%arg0: i32) -> (i32, i32) {
    %c0_i32 = arith.constant 0 : i32
    %c0_i32_0 = arith.constant 0 : i32
    %c0_i32_1 = arith.constant 0 : i32
    return %c0_i32, %c0_i32_0 : i32, i32
  }
  func.func @transform_10(%arg0: i32) -> (i32, i32, i32) {
    %c0_i32 = arith.constant 0 : i32
    %c0_i32_0 = arith.constant 0 : i32
    %c0_i32_1 = arith.constant 0 : i32
    return %arg0, %c0_i32, %c0_i32_0 : i32, i32, i32
  }
  func.func @transform_11(%arg0: i32) -> (i32, i32, i32) {
    %c0_i32 = arith.constant 0 : i32
    %c0_i32_0 = arith.constant 0 : i32
    %c0_i32_1 = arith.constant 0 : i32
    return %arg0, %c0_i32, %c0_i32_0 : i32, i32, i32
  }
  func.func @transform_12(%arg0: i32) -> (i32, i32, i32, i32) {
    %c0_i32 = arith.constant 0 : i32
    %c0_i32_0 = arith.constant 0 : i32
    %c0_i32_1 = arith.constant 0 : i32
    %c0_i32_2 = arith.constant 0 : i32
    return %arg0, %c0_i32, %c0_i32_0, %c0_i32_1 : i32, i32, i32, i32
  }
}

</mosaic_0001>

<llo_original>
// kernel: tpu_custom_call.1
$region0: #{tpu_custom_call.1}
  #allocation0 [shape = 'u32[]', space=smem, size = 0x4, offset = 0x4, fixed_abs, tag = 'smem constant byte address 0x4 - core index']
  #allocation1 [shape = 'u32[144,128]{1,0:T(1,128)}', space=vmem, size = 0x12000, scoped, tag = 'internal scratch']
  #allocation2 [shape = 'f32[2,10,10,8]{3,2,1,0:T(8,128)}', space=vmem, size = 0x28000, scoped, tag = 'scratch operand']
  %s0 = inlined_call_operand.vmem [shape: f32[2,8,8,8], index: 0, kind: input, shape index: {}]
  %s1 = inlined_call_operand.vmem [shape: f32[2,8,8,1], index: 1, kind: input, shape index: {}]
  %s2 = inlined_call_operand.vmem [shape: f32[72,8], index: 2, kind: input, shape index: {}]
  %s3 = inlined_call_operand.vmem [shape: f32[1,8], index: 3, kind: input, shape index: {}]
  %s4 = inlined_call_operand.vmem [shape: f32[72,8], index: 4, kind: input, shape index: {}]
  %s5 = inlined_call_operand.vmem [shape: f32[1,8], index: 5, kind: input, shape index: {}]
  %s6 = inlined_call_operand.vmem [shape: f32[24,8], index: 6, kind: input, shape index: {}]
  %s7 = inlined_call_operand.vmem [shape: f32[1,8], index: 7, kind: input, shape index: {}]
  %s8 = inlined_call_operand.vmem [shape: f32[8,16], index: 8, kind: input, shape index: {}]
  %s9 = inlined_call_operand.vmem [shape: f32[1,16], index: 9, kind: input, shape index: {}]
  %s10 = inlined_call_operand.vmem [shape: f32[2,1,1], index: 10, kind: input, shape index: {}]
  %s11 = inlined_call_operand.vmem [shape: f32[2,1,1], index: 11, kind: input, shape index: {}]
  %s12 = inlined_call_operand.hbm [shape: f32[2,8,8,8], index: 12, kind: output, shape index: {}]
  %s13 = sld [smem:[#allocation0]]
  $region58: #{tpu_custom_call.1} parent=0
    _
  %s15 = ssub.s32 1, %s13
  %s16 = scalar_select 0, %s15, %s13
  $region1: #{tpu_custom_call.1} parent=0
    #allocation3 [shape = 'u8[65536]{0}', space=vmem, size = 0x10000, scoped, tag = 'output window, operand 0, single buffered']
    #allocation4 [shape = 's32[1]{0}', space=sflag, size = 0x4, scoped, tag = 'scoped memory for tpu_custom_call.1']
    %17 = vsyncpa [#allocation4], 0
    // Predicated region
    $region2: #{tpu_custom_call.1} parent=1 // pred_check
      _
    $region3: #{tpu_custom_call.1} parent=1 // pred_check_branch
      %19 = sbr.rel (0) target = $region5
    $region4: #{tpu_custom_call.1} parent=1 // pred_region
      _
    $region5: #{tpu_custom_call.1} parent=1 // pred_fallthru
      _
    // Predicated region
    $region6: #{tpu_custom_call.1} parent=1 // pred_check
      _
    $region7: #{tpu_custom_call.1} parent=1 // pred_check_branch
      %21 = sbr.rel (0) target = $region9
    $region8: #{tpu_custom_call.1} parent=1 // pred_region
      _
    $region9: #{tpu_custom_call.1} parent=1 // pred_fallthru
      _
    // Predicated region
    $region10: #{tpu_custom_call.1} parent=1 // pred_check
      _
    $region11: #{tpu_custom_call.1} parent=1 // pred_check_branch
      %23 = sbr.rel (0) target = $region13
    $region12: #{tpu_custom_call.1} parent=1 // pred_region
      _
    $region13: #{tpu_custom_call.1} parent=1 // pred_fallthru
      _
    // Predicated region
    $region14: #{tpu_custom_call.1} parent=1 // pred_check
      _
    $region15: #{tpu_custom_call.1} parent=1 // pred_check_branch
      %25 = sbr.rel (0) target = $region17
    $region16: #{tpu_custom_call.1} parent=1 // pred_region
      _
    $region17: #{tpu_custom_call.1} parent=1 // pred_fallthru
      _
    // Predicated region
    $region18: #{tpu_custom_call.1} parent=1 // pred_check
      _
    $region19: #{tpu_custom_call.1} parent=1 // pred_check_branch
      %27 = sbr.rel (0) target = $region21
    $region20: #{tpu_custom_call.1} parent=1 // pred_region
      _
    $region21: #{tpu_custom_call.1} parent=1 // pred_fallthru
      _
    // Predicated region
    $region22: #{tpu_custom_call.1} parent=1 // pred_check
      _
    $region23: #{tpu_custom_call.1} parent=1 // pred_check_branch
      %29 = sbr.rel (0) target = $region25
    $region24: #{tpu_custom_call.1} parent=1 // pred_region
      _
    $region25: #{tpu_custom_call.1} parent=1 // pred_fallthru
      _
    // Predicated region
    $region26: #{tpu_custom_call.1} parent=1 // pred_check
      _
    $region27: #{tpu_custom_call.1} parent=1 // pred_check_branch
      %31 = sbr.rel (0) target = $region29
    $region28: #{tpu_custom_call.1} parent=1 // pred_region
      _
    $region29: #{tpu_custom_call.1} parent=1 // pred_fallthru
      _
    // Predicated region
    $region30: #{tpu_custom_call.1} parent=1 // pred_check
      _
    $region31: #{tpu_custom_call.1} parent=1 // pred_check_branch
      %33 = sbr.rel (0) target = $region33
    $region32: #{tpu_custom_call.1} parent=1 // pred_region
      _
    $region33: #{tpu_custom_call.1} parent=1 // pred_fallthru
      _
    // Predicated region
    $region34: #{tpu_custom_call.1} parent=1 // pred_check
      _
    $region35: #{tpu_custom_call.1} parent=1 // pred_check_branch
      %35 = sbr.rel (0) target = $region37
    $region36: #{tpu_custom_call.1} parent=1 // pred_region
      _
    $region37: #{tpu_custom_call.1} parent=1 // pred_fallthru
      _
    // Predicated region
    $region38: #{tpu_custom_call.1} parent=1 // pred_check
      _
    $region39: #{tpu_custom_call.1} parent=1 // pred_check_branch
      %37 = sbr.rel (0) target = $region41
    $region40: #{tpu_custom_call.1} parent=1 // pred_region
      _
    $region41: #{tpu_custom_call.1} parent=1 // pred_fallthru
      _
    // Predicated region
    $region42: #{tpu_custom_call.1} parent=1 // pred_check
      _
    $region43: #{tpu_custom_call.1} parent=1 // pred_check_branch
      %39 = sbr.rel (0) target = $region45
    $region44: #{tpu_custom_call.1} parent=1 // pred_region
      _
    $region45: #{tpu_custom_call.1} parent=1 // pred_fallthru
      _
    // Predicated region
    $region46: #{tpu_custom_call.1} parent=1 // pred_check
      _
    $region47: #{tpu_custom_call.1} parent=1 // pred_check_branch
      %41 = sbr.rel (0) target = $region49
    $region48: #{tpu_custom_call.1} parent=1 // pred_region
      _
    $region49: #{tpu_custom_call.1} parent=1 // pred_fallthru
      _
    %v42 = vld [vmem:[%s0] sm:$0xff]
    %v43 = vld [vmem:[%s0 + $0x8] sm:$0xff]
    %v44 = vld [vmem:[%s0 + $0x10] sm:$0xff]
    %v45 = vld [vmem:[%s0 + $0x18] sm:$0xff]
    %v46 = vld [vmem:[%s0 + $0x20] sm:$0xff]
    %v47 = vld [vmem:[%s0 + $0x28] sm:$0xff]
    %v48 = vld [vmem:[%s0 + $0x30] sm:$0xff]
    %v49 = vld [vmem:[%s0 + $0x38] sm:$0xff]
    %v50 = vld [vmem:[%s0 + $0x40] sm:$0xff]
    %v51 = vld [vmem:[%s0 + $0x48] sm:$0xff]
    %v52 = vld [vmem:[%s0 + $0x50] sm:$0xff]
    %v53 = vld [vmem:[%s0 + $0x58] sm:$0xff]
    %v54 = vld [vmem:[%s0 + $0x60] sm:$0xff]
    %v55 = vld [vmem:[%s0 + $0x68] sm:$0xff]
    %v56 = vld [vmem:[%s0 + $0x70] sm:$0xff]
    %v57 = vld [vmem:[%s0 + $0x78] sm:$0xff]
    %v58 = vld [vmem:[%s1] sm:$0xff]
    %v59 = vld [vmem:[%s1 + $0x8] sm:$0xff]
    %v60 = vld [vmem:[%s1 + $0x10] sm:$0xff]
    %v61 = vld [vmem:[%s1 + $0x18] sm:$0xff]
    %v62 = vld [vmem:[%s1 + $0x20] sm:$0xff]
    %v63 = vld [vmem:[%s1 + $0x28] sm:$0xff]
    %v64 = vld [vmem:[%s1 + $0x30] sm:$0xff]
    %v65 = vld [vmem:[%s1 + $0x38] sm:$0xff]
    %v66 = vld [vmem:[%s1 + $0x40] sm:$0xff]
    %v67 = vld [vmem:[%s1 + $0x48] sm:$0xff]
    %v68 = vld [vmem:[%s1 + $0x50] sm:$0xff]
    %v69 = vld [vmem:[%s1 + $0x58] sm:$0xff]
    %v70 = vld [vmem:[%s1 + $0x60] sm:$0xff]
    %v71 = vld [vmem:[%s1 + $0x68] sm:$0xff]
    %v72 = vld [vmem:[%s1 + $0x70] sm:$0xff]
    %v73 = vld [vmem:[%s1 + $0x78] sm:$0xff]
    %v74 = vld [vmem:[%s3] sm:$0x1]
    %vm75 = vcmask 64512
    %76 = vst.msk [vmem:[#allocation2] sm:$0xff] %vm75, 0.0
    %vm77 = vcmask 58368
    %78 = vst.msk [vmem:[#allocation2 + $0x8] sm:$0x3] %vm77, 0.0
    %79 = vst.msk [vmem:[#allocation2 + $0x10] sm:$0xff] %vm75, 0.0
    %80 = vst.msk [vmem:[#allocation2 + $0x18] sm:$0x3] %vm77, 0.0
    %81 = vst.msk [vmem:[#allocation2 + $0x20] sm:$0xff] %vm75, 0.0
    %82 = vst.msk [vmem:[#allocation2 + $0x28] sm:$0x3] %vm77, 0.0
    %83 = vst.msk [vmem:[#allocation2 + $0x30] sm:$0xff] %vm75, 0.0
    %84 = vst.msk [vmem:[#allocation2 + $0x38] sm:$0x3] %vm77, 0.0
    %85 = vst.msk [vmem:[#allocation2 + $0x40] sm:$0xff] %vm75, 0.0
    %86 = vst.msk [vmem:[#allocation2 + $0x48] sm:$0x3] %vm77, 0.0
    %87 = vst.msk [vmem:[#allocation2 + $0x50] sm:$0xff] %vm75, 0.0
    %88 = vst.msk [vmem:[#allocation2 + $0x58] sm:$0x3] %vm77, 0.0
    %89 = vst.msk [vmem:[#allocation2 + $0x60] sm:$0xff] %vm75, 0.0
    %90 = vst.msk [vmem:[#allocation2 + $0x68] sm:$0x3] %vm77, 0.0
    %91 = vst.msk [vmem:[#allocation2 + $0x70] sm:$0xff] %vm75, 0.0
    %92 = vst.msk [vmem:[#allocation2 + $0x78] sm:$0x3] %vm77, 0.0
    %93 = vst.msk [vmem:[#allocation2 + $0x80] sm:$0xff] %vm75, 0.0
    %94 = vst.msk [vmem:[#allocation2 + $0x88] sm:$0x3] %vm77, 0.0
    %95 = vst.msk [vmem:[#allocation2 + $0x90] sm:$0xff] %vm75, 0.0
    %96 = vst.msk [vmem:[#allocation2 + $0x98] sm:$0x3] %vm77, 0.0
    %97 = vst.msk [vmem:[#allocation2 + $0xa0] sm:$0xff] %vm75, 0.0
    %98 = vst.msk [vmem:[#allocation2 + $0xa8] sm:$0x3] %vm77, 0.0
    %99 = vst.msk [vmem:[#allocation2 + $0xb0] sm:$0xff] %vm75, 0.0
    %100 = vst.msk [vmem:[#allocation2 + $0xb8] sm:$0x3] %vm77, 0.0
    %101 = vst.msk [vmem:[#allocation2 + $0xc0] sm:$0xff] %vm75, 0.0
    %102 = vst.msk [vmem:[#allocation2 + $0xc8] sm:$0x3] %vm77, 0.0
    %103 = vst.msk [vmem:[#allocation2 + $0xd0] sm:$0xff] %vm75, 0.0
    %104 = vst.msk [vmem:[#allocation2 + $0xd8] sm:$0x3] %vm77, 0.0
    %105 = vst.msk [vmem:[#allocation2 + $0xe0] sm:$0xff] %vm75, 0.0
    %106 = vst.msk [vmem:[#allocation2 + $0xe8] sm:$0x3] %vm77, 0.0
    %107 = vst.msk [vmem:[#allocation2 + $0xf0] sm:$0xff] %vm75, 0.0
    %108 = vst.msk [vmem:[#allocation2 + $0xf8] sm:$0x3] %vm77, 0.0
    %109 = vst.msk [vmem:[#allocation2 + $0x100] sm:$0xff] %vm75, 0.0
    %110 = vst.msk [vmem:[#allocation2 + $0x108] sm:$0x3] %vm77, 0.0
    %111 = vst.msk [vmem:[#allocation2 + $0x110] sm:$0xff] %vm75, 0.0
    %112 = vst.msk [vmem:[#allocation2 + $0x118] sm:$0x3] %vm77, 0.0
    %113 = vst.msk [vmem:[#allocation2 + $0x120] sm:$0xff] %vm75, 0.0
    %114 = vst.msk [vmem:[#allocation2 + $0x128] sm:$0x3] %vm77, 0.0
    %115 = vst.msk [vmem:[#allocation2 + $0x130] sm:$0xff] %vm75, 0.0
    %116 = vst.msk [vmem:[#allocation2 + $0x138] sm:$0x3] %vm77, 0.0
    %s117 = scalar_lea.vmem [#allocation2], 16
    %118 = vst.msk [vmem:[%s117 + $0x1] sm:$0xff] %vm75, %v42
    %119 = vst.msk [vmem:[%s117 + $0x11] sm:$0xff] %vm75, %v43
    %120 = vst.msk [vmem:[%s117 + $0x21] sm:$0xff] %vm75, %v44
    %121 = vst.msk [vmem:[%s117 + $0x31] sm:$0xff] %vm75, %v45
    %122 = vst.msk [vmem:[%s117 + $0x41] sm:$0xff] %vm75, %v46
    %123 = vst.msk [vmem:[%s117 + $0x51] sm:$0xff] %vm75, %v47
    %124 = vst.msk [vmem:[%s117 + $0x61] sm:$0xff] %vm75, %v48
    %125 = vst.msk [vmem:[%s117 + $0x71] sm:$0xff] %vm75, %v49
    %126 = vst.msk [vmem:[%s117 + $0xa1] sm:$0xff] %vm75, %v50
    %127 = vst.msk [vmem:[%s117 + $0xb1] sm:$0xff] %vm75, %v51
    %128 = vst.msk [vmem:[%s117 + $0xc1] sm:$0xff] %vm75, %v52
    %129 = vst.msk [vmem:[%s117 + $0xd1] sm:$0xff] %vm75, %v53
    %130 = vst.msk [vmem:[%s117 + $0xe1] sm:$0xff] %vm75, %v54
    %131 = vst.msk [vmem:[%s117 + $0xf1] sm:$0xff] %vm75, %v55
    %132 = vst.msk [vmem:[%s117 + $0x101] sm:$0xff] %vm75, %v56
    %133 = vst.msk [vmem:[%s117 + $0x111] sm:$0xff] %vm75, %v57
    %v134 = vld [vmem:[#allocation2] sm:$0xff]
    %v135 = vld [vmem:[#allocation2 + $0x8] sm:$0x3]
    %v136 = vld [vmem:[#allocation2 + $0x10] sm:$0xff]
    %v137 = vld [vmem:[#allocation2 + $0x18] sm:$0x3]
    %v138 = vld [vmem:[#allocation2 + $0x20] sm:$0xff]
    %v139 = vld [vmem:[#allocation2 + $0x28] sm:$0x3]
    %v140 = vld [vmem:[#allocation2 + $0x30] sm:$0xff]
    %v141 = vld [vmem:[#allocation2 + $0x38] sm:$0x3]
    %v142 = vld [vmem:[#allocation2 + $0x40] sm:$0xff]
    %v143 = vld [vmem:[#allocation2 + $0x48] sm:$0x3]
    %v144 = vld [vmem:[#allocation2 + $0x50] sm:$0xff]
    %v145 = vld [vmem:[#allocation2 + $0x58] sm:$0x3]
    %v146 = vld [vmem:[#allocation2 + $0x60] sm:$0xff]
    %v147 = vld [vmem:[#allocation2 + $0x68] sm:$0x3]
    %v148 = vld [vmem:[#allocation2 + $0x70] sm:$0xff]
    %v149 = vld [vmem:[#allocation2 + $0x78] sm:$0x3]
    %v150 = vld [vmem:[#allocation2 + $0x80] sm:$0xff]
    %v151 = vld [vmem:[#allocation2 + $0x88] sm:$0x3]
    %v152 = vld [vmem:[#allocation2 + $0x90] sm:$0xff]
    %v153 = vld [vmem:[#allocation2 + $0x98] sm:$0x3]
    %v154 = vld [vmem:[#allocation2 + $0xa0] sm:$0xff]
    %v155 = vld [vmem:[#allocation2 + $0xa8] sm:$0x3]
    %v156 = vld [vmem:[#allocation2 + $0xb0] sm:$0xff]
    %v157 = vld [vmem:[#allocation2 + $0xb8] sm:$0x3]
    %v158 = vld [vmem:[#allocation2 + $0xc0] sm:$0xff]
    %v159 = vld [vmem:[#allocation2 + $0xc8] sm:$0x3]
    %v160 = vld [vmem:[#allocation2 + $0xd0] sm:$0xff]
    %v161 = vld [vmem:[#allocation2 + $0xd8] sm:$0x3]
    %v162 = vld [vmem:[#allocation2 + $0xe0] sm:$0xff]
    %v163 = vld [vmem:[#allocation2 + $0xe8] sm:$0x3]
    %v164 = vld [vmem:[#allocation2 + $0xf0] sm:$0xff]
    %v165 = vld [vmem:[#allocation2 + $0xf8] sm:$0x3]
    %v166 = vld [vmem:[#allocation2 + $0x100] sm:$0xff]
    %v167 = vld [vmem:[#allocation2 + $0x108] sm:$0x3]
    %v168 = vld [vmem:[#allocation2 + $0x110] sm:$0xff]
    %v169 = vld [vmem:[#allocation2 + $0x118] sm:$0x3]
    %v170 = vld [vmem:[#allocation2 + $0x120] sm:$0xff]
    %v171 = vld [vmem:[#allocation2 + $0x128] sm:$0x3]
    %v172 = vld [vmem:[#allocation2 + $0x130] sm:$0xff]
    %v173 = vld [vmem:[#allocation2 + $0x138] sm:$0x3]
    %vm206 = vcmask 1046528
    %v207 = vrot.slane %v134, 1
    %v208 = vrot.slane %v135, 1
    %v209 = vsel %vm206, %v207, %v208
    %v210 = vrot.slane %v136, 1
    %v211 = vrot.slane %v137, 1
    %v212 = vsel %vm206, %v210, %v211
    %v213 = vrot.slane %v138, 1
    %v214 = vrot.slane %v139, 1
    %v215 = vsel %vm206, %v213, %v214
    %v216 = vrot.slane %v140, 1
    %v217 = vrot.slane %v141, 1
    %v218 = vsel %vm206, %v216, %v217
    %v219 = vrot.slane %v142, 1
    %v220 = vrot.slane %v143, 1
    %v221 = vsel %vm206, %v219, %v220
    %v222 = vrot.slane %v144, 1
    %v223 = vrot.slane %v145, 1
    %v224 = vsel %vm206, %v222, %v223
    %v225 = vrot.slane %v146, 1
    %v226 = vrot.slane %v147, 1
    %v227 = vsel %vm206, %v225, %v226
    %v228 = vrot.slane %v148, 1
    %v229 = vrot.slane %v149, 1
    %v230 = vsel %vm206, %v228, %v229
    %v231 = vrot.slane %v154, 1
    %v232 = vrot.slane %v155, 1
    %v233 = vsel %vm206, %v231, %v232
    %v234 = vrot.slane %v156, 1
    %v235 = vrot.slane %v157, 1
    %v236 = vsel %vm206, %v234, %v235
    %v237 = vrot.slane %v158, 1
    %v238 = vrot.slane %v159, 1
    %v239 = vsel %vm206, %v237, %v238
    %v240 = vrot.slane %v160, 1
    %v241 = vrot.slane %v161, 1
    %v242 = vsel %vm206, %v240, %v241
    %v243 = vrot.slane %v162, 1
    %v244 = vrot.slane %v163, 1
    %v245 = vsel %vm206, %v243, %v244
    %v246 = vrot.slane %v164, 1
    %v247 = vrot.slane %v165, 1
    %v248 = vsel %vm206, %v246, %v247
    %v249 = vrot.slane %v166, 1
    %v250 = vrot.slane %v167, 1
    %v251 = vsel %vm206, %v249, %v250
    %v252 = vrot.slane %v168, 1
    %v253 = vrot.slane %v169, 1
    %v254 = vsel %vm206, %v252, %v253
    %vm255 = vcmask 1045504
    %v256 = vrot.slane %v134, 2
    %v257 = vrot.slane %v135, 2
    %v258 = vsel %vm255, %v256, %v257
    %v259 = vrot.slane %v136, 2
    %v260 = vrot.slane %v137, 2
    %v261 = vsel %vm255, %v259, %v260
    %v262 = vrot.slane %v138, 2
    %v263 = vrot.slane %v139, 2
    %v264 = vsel %vm255, %v262, %v263
    %v265 = vrot.slane %v140, 2
    %v266 = vrot.slane %v141, 2
    %v267 = vsel %vm255, %v265, %v266
    %v268 = vrot.slane %v142, 2
    %v269 = vrot.slane %v143, 2
    %v270 = vsel %vm255, %v268, %v269
    %v271 = vrot.slane %v144, 2
    %v272 = vrot.slane %v145, 2
    %v273 = vsel %vm255, %v271, %v272
    %v274 = vrot.slane %v146, 2
    %v275 = vrot.slane %v147, 2
    %v276 = vsel %vm255, %v274, %v275
    %v277 = vrot.slane %v148, 2
    %v278 = vrot.slane %v149, 2
    %v279 = vsel %vm255, %v277, %v278
    %v280 = vrot.slane %v154, 2
    %v281 = vrot.slane %v155, 2
    %v282 = vsel %vm255, %v280, %v281
    %v283 = vrot.slane %v156, 2
    %v284 = vrot.slane %v157, 2
    %v285 = vsel %vm255, %v283, %v284
    %v286 = vrot.slane %v158, 2
    %v287 = vrot.slane %v159, 2
    %v288 = vsel %vm255, %v286, %v287
    %v289 = vrot.slane %v160, 2
    %v290 = vrot.slane %v161, 2
    %v291 = vsel %vm255, %v289, %v290
    %v292 = vrot.slane %v162, 2
    %v293 = vrot.slane %v163, 2
    %v294 = vsel %vm255, %v292, %v293
    %v295 = vrot.slane %v164, 2
    %v296 = vrot.slane %v165, 2
    %v297 = vsel %vm255, %v295, %v296
    %v298 = vrot.slane %v166, 2
    %v299 = vrot.slane %v167, 2
    %v300 = vsel %vm255, %v298, %v299
    %v301 = vrot.slane %v168, 2
    %v302 = vrot.slane %v169, 2
    %v303 = vsel %vm255, %v301, %v302
    %v308 = vrot.slane %v150, 1
    %v309 = vrot.slane %v151, 1
    %v310 = vsel %vm206, %v308, %v309
    %v311 = vrot.slane %v170, 1
    %v312 = vrot.slane %v171, 1
    %v313 = vsel %vm206, %v311, %v312
    %v314 = vrot.slane %v150, 2
    %v315 = vrot.slane %v151, 2
    %v316 = vsel %vm255, %v314, %v315
    %v317 = vrot.slane %v170, 2
    %v318 = vrot.slane %v171, 2
    %v319 = vsel %vm255, %v317, %v318
    %v324 = vrot.slane %v152, 1
    %v325 = vrot.slane %v153, 1
    %v326 = vsel %vm206, %v324, %v325
    %v327 = vrot.slane %v172, 1
    %v328 = vrot.slane %v173, 1
    %v329 = vsel %vm206, %v327, %v328
    %v330 = vrot.slane %v152, 2
    %v331 = vrot.slane %v153, 2
    %v332 = vsel %vm255, %v330, %v331
    %v333 = vrot.slane %v172, 2
    %v334 = vrot.slane %v173, 2
    %v335 = vsel %vm255, %v333, %v334
    %336 = vrot.lane.b32.xlu0 %v209, 8
    %v337 = vpop.permute.xlu0 %336
    %338 = vrot.lane.b32.xlu0 %v212, 8
    %v339 = vpop.permute.xlu0 %338
    %340 = vrot.lane.b32.xlu0 %v215, 8
    %v341 = vpop.permute.xlu0 %340
    %342 = vrot.lane.b32.xlu0 %v218, 8
    %v343 = vpop.permute.xlu0 %342
    %344 = vrot.lane.b32.xlu0 %v221, 8
    %v345 = vpop.permute.xlu0 %344
    %346 = vrot.lane.b32.xlu0 %v224, 8
    %v347 = vpop.permute.xlu0 %346
    %348 = vrot.lane.b32.xlu0 %v227, 8
    %v349 = vpop.permute.xlu0 %348
    %350 = vrot.lane.b32.xlu0 %v230, 8
    %v351 = vpop.permute.xlu0 %350
    %352 = vrot.lane.b32.xlu0 %v233, 8
    %v353 = vpop.permute.xlu0 %352
    %354 = vrot.lane.b32.xlu0 %v236, 8
    %v355 = vpop.permute.xlu0 %354
    %356 = vrot.lane.b32.xlu0 %v239, 8
    %v357 = vpop.permute.xlu0 %356
    %358 = vrot.lane.b32.xlu0 %v242, 8
    %v359 = vpop.permute.xlu0 %358
    %360 = vrot.lane.b32.xlu0 %v245, 8
    %v361 = vpop.permute.xlu0 %360
    %362 = vrot.lane.b32.xlu0 %v248, 8
    %v363 = vpop.permute.xlu0 %362
    %364 = vrot.lane.b32.xlu0 %v251, 8
    %v365 = vpop.permute.xlu0 %364
    %366 = vrot.lane.b32.xlu0 %v254, 8
    %v367 = vpop.permute.xlu0 %366
    %384 = vrot.lane.b32.xlu0 %v258, 16
    %v385 = vpop.permute.xlu0 %384
    %386 = vrot.lane.b32.xlu0 %v261, 16
    %v387 = vpop.permute.xlu0 %386
    %388 = vrot.lane.b32.xlu0 %v264, 16
    %v389 = vpop.permute.xlu0 %388
    %390 = vrot.lane.b32.xlu0 %v267, 16
    %v391 = vpop.permute.xlu0 %390
    %392 = vrot.lane.b32.xlu0 %v270, 16
    %v393 = vpop.permute.xlu0 %392
    %394 = vrot.lane.b32.xlu0 %v273, 16
    %v395 = vpop.permute.xlu0 %394
    %396 = vrot.lane.b32.xlu0 %v276, 16
    %v397 = vpop.permute.xlu0 %396
    %398 = vrot.lane.b32.xlu0 %v279, 16
    %v399 = vpop.permute.xlu0 %398
    %400 = vrot.lane.b32.xlu0 %v282, 16
    %v401 = vpop.permute.xlu0 %400
    %402 = vrot.lane.b32.xlu0 %v285, 16
    %v403 = vpop.permute.xlu0 %402
    %404 = vrot.lane.b32.xlu0 %v288, 16
    %v405 = vpop.permute.xlu0 %404
    %406 = vrot.lane.b32.xlu0 %v291, 16
    %v407 = vpop.permute.xlu0 %406
    %408 = vrot.lane.b32.xlu0 %v294, 16
    %v409 = vpop.permute.xlu0 %408
    %410 = vrot.lane.b32.xlu0 %v297, 16
    %v411 = vpop.permute.xlu0 %410
    %412 = vrot.lane.b32.xlu0 %v300, 16
    %v413 = vpop.permute.xlu0 %412
    %414 = vrot.lane.b32.xlu0 %v303, 16
    %v415 = vpop.permute.xlu0 %414
    %432 = vrot.lane.b32.xlu0 %v136, 24
    %v433 = vpop.permute.xlu0 %432
    %434 = vrot.lane.b32.xlu0 %v138, 24
    %v435 = vpop.permute.xlu0 %434
    %436 = vrot.lane.b32.xlu0 %v140, 24
    %v437 = vpop.permute.xlu0 %436
    %438 = vrot.lane.b32.xlu0 %v142, 24
    %v439 = vpop.permute.xlu0 %438
    %440 = vrot.lane.b32.xlu0 %v144, 24
    %v441 = vpop.permute.xlu0 %440
    %442 = vrot.lane.b32.xlu0 %v146, 24
    %v443 = vpop.permute.xlu0 %442
    %444 = vrot.lane.b32.xlu0 %v148, 24
    %v445 = vpop.permute.xlu0 %444
    %446 = vrot.lane.b32.xlu0 %v150, 24
    %v447 = vpop.permute.xlu0 %446
    %448 = vrot.lane.b32.xlu0 %v156, 24
    %v449 = vpop.permute.xlu0 %448
    %450 = vrot.lane.b32.xlu0 %v158, 24
    %v451 = vpop.permute.xlu0 %450
    %452 = vrot.lane.b32.xlu0 %v160, 24
    %v453 = vpop.permute.xlu0 %452
    %454 = vrot.lane.b32.xlu0 %v162, 24
    %v455 = vpop.permute.xlu0 %454
    %456 = vrot.lane.b32.xlu0 %v164, 24
    %v457 = vpop.permute.xlu0 %456
    %458 = vrot.lane.b32.xlu0 %v166, 24
    %v459 = vpop.permute.xlu0 %458
    %460 = vrot.lane.b32.xlu0 %v168, 24
    %v461 = vpop.permute.xlu0 %460
    %462 = vrot.lane.b32.xlu0 %v170, 24
    %v463 = vpop.permute.xlu0 %462
    %480 = vrot.lane.b32.xlu0 %v212, 32
    %v481 = vpop.permute.xlu0 %480
    %482 = vrot.lane.b32.xlu0 %v215, 32
    %v483 = vpop.permute.xlu0 %482
    %484 = vrot.lane.b32.xlu0 %v218, 32
    %v485 = vpop.permute.xlu0 %484
    %486 = vrot.lane.b32.xlu0 %v221, 32
    %v487 = vpop.permute.xlu0 %486
    %488 = vrot.lane.b32.xlu0 %v224, 32
    %v489 = vpop.permute.xlu0 %488
    %490 = vrot.lane.b32.xlu0 %v227, 32
    %v491 = vpop.permute.xlu0 %490
    %492 = vrot.lane.b32.xlu0 %v230, 32
    %v493 = vpop.permute.xlu0 %492
    %494 = vrot.lane.b32.xlu0 %v310, 32
    %v495 = vpop.permute.xlu0 %494
    %496 = vrot.lane.b32.xlu0 %v236, 32
    %v497 = vpop.permute.xlu0 %496
    %498 = vrot.lane.b32.xlu0 %v239, 32
    %v499 = vpop.permute.xlu0 %498
    %500 = vrot.lane.b32.xlu0 %v242, 32
    %v501 = vpop.permute.xlu0 %500
    %502 = vrot.lane.b32.xlu0 %v245, 32
    %v503 = vpop.permute.xlu0 %502
    %504 = vrot.lane.b32.xlu0 %v248, 32
    %v505 = vpop.permute.xlu0 %504
    %506 = vrot.lane.b32.xlu0 %v251, 32
    %v507 = vpop.permute.xlu0 %506
    %508 = vrot.lane.b32.xlu0 %v254, 32
    %v509 = vpop.permute.xlu0 %508
    %510 = vrot.lane.b32.xlu0 %v313, 32
    %v511 = vpop.permute.xlu0 %510
    %528 = vrot.lane.b32.xlu0 %v261, 40
    %v529 = vpop.permute.xlu0 %528
    %530 = vrot.lane.b32.xlu0 %v264, 40
    %v531 = vpop.permute.xlu0 %530
    %532 = vrot.lane.b32.xlu0 %v267, 40
    %v533 = vpop.permute.xlu0 %532
    %534 = vrot.lane.b32.xlu0 %v270, 40
    %v535 = vpop.permute.xlu0 %534
    %536 = vrot.lane.b32.xlu0 %v273, 40
    %v537 = vpop.permute.xlu0 %536
    %538 = vrot.lane.b32.xlu0 %v276, 40
    %v539 = vpop.permute.xlu0 %538
    %540 = vrot.lane.b32.xlu0 %v279, 40
    %v541 = vpop.permute.xlu0 %540
    %542 = vrot.lane.b32.xlu0 %v316, 40
    %v543 = vpop.permute.xlu0 %542
    %544 = vrot.lane.b32.xlu0 %v285, 40
    %v545 = vpop.permute.xlu0 %544
    %546 = vrot.lane.b32.xlu0 %v288, 40
    %v547 = vpop.permute.xlu0 %546
    %548 = vrot.lane.b32.xlu0 %v291, 40
    %v549 = vpop.permute.xlu0 %548
    %550 = vrot.lane.b32.xlu0 %v294, 40
    %v551 = vpop.permute.xlu0 %550
    %552 = vrot.lane.b32.xlu0 %v297, 40
    %v553 = vpop.permute.xlu0 %552
    %554 = vrot.lane.b32.xlu0 %v300, 40
    %v555 = vpop.permute.xlu0 %554
    %556 = vrot.lane.b32.xlu0 %v303, 40
    %v557 = vpop.permute.xlu0 %556
    %558 = vrot.lane.b32.xlu0 %v319, 40
    %v559 = vpop.permute.xlu0 %558
    %576 = vrot.lane.b32.xlu0 %v138, 48
    %v577 = vpop.permute.xlu0 %576
    %578 = vrot.lane.b32.xlu0 %v140, 48
    %v579 = vpop.permute.xlu0 %578
    %580 = vrot.lane.b32.xlu0 %v142, 48
    %v581 = vpop.permute.xlu0 %580
    %582 = vrot.lane.b32.xlu0 %v144, 48
    %v583 = vpop.permute.xlu0 %582
    %584 = vrot.lane.b32.xlu0 %v146, 48
    %v585 = vpop.permute.xlu0 %584
    %586 = vrot.lane.b32.xlu0 %v148, 48
    %v587 = vpop.permute.xlu0 %586
    %588 = vrot.lane.b32.xlu0 %v150, 48
    %v589 = vpop.permute.xlu0 %588
    %590 = vrot.lane.b32.xlu0 %v152, 48
    %v591 = vpop.permute.xlu0 %590
    %592 = vrot.lane.b32.xlu0 %v158, 48
    %v593 = vpop.permute.xlu0 %592
    %594 = vrot.lane.b32.xlu0 %v160, 48
    %v595 = vpop.permute.xlu0 %594
    %596 = vrot.lane.b32.xlu0 %v162, 48
    %v597 = vpop.permute.xlu0 %596
    %598 = vrot.lane.b32.xlu0 %v164, 48
    %v599 = vpop.permute.xlu0 %598
    %600 = vrot.lane.b32.xlu0 %v166, 48
    %v601 = vpop.permute.xlu0 %600
    %602 = vrot.lane.b32.xlu0 %v168, 48
    %v603 = vpop.permute.xlu0 %602
    %604 = vrot.lane.b32.xlu0 %v170, 48
    %v605 = vpop.permute.xlu0 %604
    %606 = vrot.lane.b32.xlu0 %v172, 48
    %v607 = vpop.permute.xlu0 %606
    %624 = vrot.lane.b32.xlu0 %v215, 56
    %v625 = vpop.permute.xlu0 %624
    %626 = vrot.lane.b32.xlu0 %v218, 56
    %v627 = vpop.permute.xlu0 %626
    %628 = vrot.lane.b32.xlu0 %v221, 56
    %v629 = vpop.permute.xlu0 %628
    %630 = vrot.lane.b32.xlu0 %v224, 56
    %v631 = vpop.permute.xlu0 %630
    %632 = vrot.lane.b32.xlu0 %v227, 56
    %v633 = vpop.permute.xlu0 %632
    %634 = vrot.lane.b32.xlu0 %v230, 56
    %v635 = vpop.permute.xlu0 %634
    %636 = vrot.lane.b32.xlu0 %v310, 56
    %v637 = vpop.permute.xlu0 %636
    %638 = vrot.lane.b32.xlu0 %v326, 56
    %v639 = vpop.permute.xlu0 %638
    %640 = vrot.lane.b32.xlu0 %v239, 56
    %v641 = vpop.permute.xlu0 %640
    %642 = vrot.lane.b32.xlu0 %v242, 56
    %v643 = vpop.permute.xlu0 %642
    %644 = vrot.lane.b32.xlu0 %v245, 56
    %v645 = vpop.permute.xlu0 %644
    %646 = vrot.lane.b32.xlu0 %v248, 56
    %v647 = vpop.permute.xlu0 %646
    %648 = vrot.lane.b32.xlu0 %v251, 56
    %v649 = vpop.permute.xlu0 %648
    %650 = vrot.lane.b32.xlu0 %v254, 56
    %v651 = vpop.permute.xlu0 %650
    %652 = vrot.lane.b32.xlu0 %v313, 56
    %v653 = vpop.permute.xlu0 %652
    %654 = vrot.lane.b32.xlu0 %v329, 56
    %v655 = vpop.permute.xlu0 %654
    %672 = vrot.lane.b32.xlu0 %v264, 64
    %v673 = vpop.permute.xlu0 %672
    %674 = vrot.lane.b32.xlu0 %v267, 64
    %v675 = vpop.permute.xlu0 %674
    %676 = vrot.lane.b32.xlu0 %v270, 64
    %v677 = vpop.permute.xlu0 %676
    %678 = vrot.lane.b32.xlu0 %v273, 64
    %v679 = vpop.permute.xlu0 %678
    %680 = vrot.lane.b32.xlu0 %v276, 64
    %v681 = vpop.permute.xlu0 %680
    %682 = vrot.lane.b32.xlu0 %v279, 64
    %v683 = vpop.permute.xlu0 %682
    %684 = vrot.lane.b32.xlu0 %v316, 64
    %v685 = vpop.permute.xlu0 %684
    %686 = vrot.lane.b32.xlu0 %v332, 64
    %v687 = vpop.permute.xlu0 %686
    %688 = vrot.lane.b32.xlu0 %v288, 64
    %v689 = vpop.permute.xlu0 %688
    %690 = vrot.lane.b32.xlu0 %v291, 64
    %v691 = vpop.permute.xlu0 %690
    %692 = vrot.lane.b32.xlu0 %v294, 64
    %v693 = vpop.permute.xlu0 %692
    %694 = vrot.lane.b32.xlu0 %v297, 64
    %v695 = vpop.permute.xlu0 %694
    %696 = vrot.lane.b32.xlu0 %v300, 64
    %v697 = vpop.permute.xlu0 %696
    %698 = vrot.lane.b32.xlu0 %v303, 64
    %v699 = vpop.permute.xlu0 %698
    %700 = vrot.lane.b32.xlu0 %v319, 64
    %v701 = vpop.permute.xlu0 %700
    %702 = vrot.lane.b32.xlu0 %v335, 64
    %v703 = vpop.permute.xlu0 %702
    %v720 = vsel %vm75, %v134, %v337
    %v721 = vsel %vm75, %v136, %v339
    %v722 = vsel %vm75, %v138, %v341
    %v723 = vsel %vm75, %v140, %v343
    %v724 = vsel %vm75, %v142, %v345
    %v725 = vsel %vm75, %v144, %v347
    %v726 = vsel %vm75, %v146, %v349
    %v727 = vsel %vm75, %v148, %v351
    %v728 = vsel %vm75, %v154, %v353
    %v729 = vsel %vm75, %v156, %v355
    %v730 = vsel %vm75, %v158, %v357
    %v731 = vsel %vm75, %v160, %v359
    %v732 = vsel %vm75, %v162, %v361
    %v733 = vsel %vm75, %v164, %v363
    %v734 = vsel %vm75, %v166, %v365
    %v735 = vsel %vm75, %v168, %v367
    %vm736 = vcmask 130048
    %v737 = vsel %vm736, %v720, %v385
    %v738 = vsel %vm736, %v721, %v387
    %v739 = vsel %vm736, %v722, %v389
    %v740 = vsel %vm736, %v723, %v391
    %v741 = vsel %vm736, %v724, %v393
    %v742 = vsel %vm736, %v725, %v395
    %v743 = vsel %vm736, %v726, %v397
    %v744 = vsel %vm736, %v727, %v399
    %v745 = vsel %vm736, %v728, %v401
    %v746 = vsel %vm736, %v729, %v403
    %v747 = vsel %vm736, %v730, %v405
    %v748 = vsel %vm736, %v731, %v407
    %v749 = vsel %vm736, %v732, %v409
    %v750 = vsel %vm736, %v733, %v411
    %v751 = vsel %vm736, %v734, %v413
    %v752 = vsel %vm736, %v735, %v415
    %vm753 = vcmask 195584
    %v754 = vsel %vm753, %v737, %v433
    %v755 = vsel %vm753, %v738, %v435
    %v756 = vsel %vm753, %v739, %v437
    %v757 = vsel %vm753, %v740, %v439
    %v758 = vsel %vm753, %v741, %v441
    %v759 = vsel %vm753, %v742, %v443
    %v760 = vsel %vm753, %v743, %v445
    %v761 = vsel %vm753, %v744, %v447
    %v762 = vsel %vm753, %v745, %v449
    %v763 = vsel %vm753, %v746, %v451
    %v764 = vsel %vm753, %v747, %v453
    %v765 = vsel %vm753, %v748, %v455
    %v766 = vsel %vm753, %v749, %v457
    %v767 = vsel %vm753, %v750, %v459
    %v768 = vsel %vm753, %v751, %v461
    %v769 = vsel %vm753, %v752, %v463
    %vm770 = vcmask 261120
    %v771 = vsel %vm770, %v754, %v481
    %v772 = vsel %vm770, %v755, %v483
    %v773 = vsel %vm770, %v756, %v485
    %v774 = vsel %vm770, %v757, %v487
    %v775 = vsel %vm770, %v758, %v489
    %v776 = vsel %vm770, %v759, %v491
    %v777 = vsel %vm770, %v760, %v493
    %v778 = vsel %vm770, %v761, %v495
    %v779 = vsel %vm770, %v762, %v497
    %v780 = vsel %vm770, %v763, %v499
    %v781 = vsel %vm770, %v764, %v501
    %v782 = vsel %vm770, %v765, %v503
    %v783 = vsel %vm770, %v766, %v505
    %v784 = vsel %vm770, %v767, %v507
    %v785 = vsel %vm770, %v768, %v509
    %v786 = vsel %vm770, %v769, %v511
    %vm787 = vcmask 326656
    %v788 = vsel %vm787, %v771, %v529
    %v789 = vsel %vm787, %v772, %v531
    %v790 = vsel %vm787, %v773, %v533
    %v791 = vsel %vm787, %v774, %v535
    %v792 = vsel %vm787, %v775, %v537
    %v793 = vsel %vm787, %v776, %v539
    %v794 = vsel %vm787, %v777, %v541
    %v795 = vsel %vm787, %v778, %v543
    %v796 = vsel %vm787, %v779, %v545
    %v797 = vsel %vm787, %v780, %v547
    %v798 = vsel %vm787, %v781, %v549
    %v799 = vsel %vm787, %v782, %v551
    %v800 = vsel %vm787, %v783, %v553
    %v801 = vsel %vm787, %v784, %v555
    %v802 = vsel %vm787, %v785, %v557
    %v803 = vsel %vm787, %v786, %v559
    %vm804 = vcmask 392192
    %v805 = vsel %vm804, %v788, %v577
    %v806 = vsel %vm804, %v789, %v579
    %v807 = vsel %vm804, %v790, %v581
    %v808 = vsel %vm804, %v791, %v583
    %v809 = vsel %vm804, %v792, %v585
    %v810 = vsel %vm804, %v793, %v587
    %v811 = vsel %vm804, %v794, %v589
    %v812 = vsel %vm804, %v795, %v591
    %v813 = vsel %vm804, %v796, %v593
    %v814 = vsel %vm804, %v797, %v595
    %v815 = vsel %vm804, %v798, %v597
    %v816 = vsel %vm804, %v799, %v599
    %v817 = vsel %vm804, %v800, %v601
    %v818 = vsel %vm804, %v801, %v603
    %v819 = vsel %vm804, %v802, %v605
    %v820 = vsel %vm804, %v803, %v607
    %vm821 = vcmask 457728
    %v822 = vsel %vm821, %v805, %v625
    %v823 = vsel %vm821, %v806, %v627
    %v824 = vsel %vm821, %v807, %v629
    %v825 = vsel %vm821, %v808, %v631
    %v826 = vsel %vm821, %v809, %v633
    %v827 = vsel %vm821, %v810, %v635
    %v828 = vsel %vm821, %v811, %v637
    %v829 = vsel %vm821, %v812, %v639
    %v830 = vsel %vm821, %v813, %v641
    %v831 = vsel %vm821, %v814, %v643
    %v832 = vsel %vm821, %v815, %v645
    %v833 = vsel %vm821, %v816, %v647
    %v834 = vsel %vm821, %v817, %v649
    %v835 = vsel %vm821, %v818, %v651
    %v836 = vsel %vm821, %v819, %v653
    %v837 = vsel %vm821, %v820, %v655
    %vm838 = vcmask 523264
    %v839 = vsel %vm838, %v822, %v673
    %v840 = vsel %vm838, %v823, %v675
    %v841 = vsel %vm838, %v824, %v677
    %v842 = vsel %vm838, %v825, %v679
    %v843 = vsel %vm838, %v826, %v681
    %v844 = vsel %vm838, %v827, %v683
    %v845 = vsel %vm838, %v828, %v685
    %v846 = vsel %vm838, %v829, %v687
    %v847 = vsel %vm838, %v830, %v689
    %v848 = vsel %vm838, %v831, %v691
    %v849 = vsel %vm838, %v832, %v693
    %v850 = vsel %vm838, %v833, %v695
    %v851 = vsel %vm838, %v834, %v697
    %v852 = vsel %vm838, %v835, %v699
    %v853 = vsel %vm838, %v836, %v701
    %v854 = vsel %vm838, %v837, %v703
    %v855 = vld [vmem:[%s2] sm:$0xff]
    %v856 = vld [vmem:[%s2 + $0x8] sm:$0xff]
    %v857 = vld [vmem:[%s2 + $0x10] sm:$0xff]
    %v858 = vld [vmem:[%s2 + $0x18] sm:$0xff]
    %v859 = vld [vmem:[%s2 + $0x20] sm:$0xff]
    %v860 = vld [vmem:[%s2 + $0x28] sm:$0xff]
    %v861 = vld [vmem:[%s2 + $0x30] sm:$0xff]
    %v862 = vld [vmem:[%s2 + $0x38] sm:$0xff]
    %v863 = vld [vmem:[%s2 + $0x40] sm:$0xff]
    %vm864 = vcmask 588800
    %v866 = vsel %vm864, %v839, 0
    %v869 = vsel %vm864, %v840, 0
    %v872 = vsel %vm864, %v841, 0
    %v875 = vsel %vm864, %v842, 0
    %v878 = vsel %vm864, %v843, 0
    %v881 = vsel %vm864, %v844, 0
    %v884 = vsel %vm864, %v845, 0
    %v887 = vsel %vm864, %v846, 0
    %v890 = vsel %vm864, %v847, 0
    %v893 = vsel %vm864, %v848, 0
    %v896 = vsel %vm864, %v849, 0
    %v899 = vsel %vm864, %v850, 0
    %v902 = vsel %vm864, %v851, 0
    %v905 = vsel %vm864, %v852, 0
    %v908 = vsel %vm864, %v853, 0
    %v911 = vsel %vm864, %v854, 0
    %913 = vmatprep.subr.mxu0 0.0
    %914 = vmatpush1.msra.mxu0 0.0
    %915 = vmatprep.subr.mxu0 0.0
    %916 = vmatpush1.msra.mxu0 0.0
    %917 = vmatprep.subr.mxu0 0.0
    %918 = vmatpush1.msra.mxu0 0.0
    %919 = vmatprep.subr.mxu0 0.0
    %920 = vmatpush1.msra.mxu0 0.0
    %921 = vmatprep.subr.mxu0 0.0
    %922 = vmatpush1.msra.mxu0 0.0
    %923 = vmatprep.subr.mxu0 0.0
    %924 = vmatpush1.msra.mxu0 0.0
    %925 = vmatprep.subr.mxu0 0.0
    %926 = vmatpush1.msra.mxu0 0.0
    %927 = vmatprep.subr.mxu0 0.0
    %928 = vmatpush1.msra.mxu0 %v863
    %929 = vmatprep.subr.mxu0 0.0
    %930 = vmatpush1.msra.mxu0 %v862
    %931 = vmatprep.subr.mxu0 0.0
    %932 = vmatpush1.msra.mxu0 %v861
    %933 = vmatprep.subr.mxu0 0.0
    %934 = vmatpush1.msra.mxu0 %v860
    %935 = vmatprep.subr.mxu0 0.0
    %936 = vmatpush1.msra.mxu0 %v859
    %937 = vmatprep.subr.mxu0 0.0
    %938 = vmatpush1.msra.mxu0 %v858
    %939 = vmatprep.subr.mxu0 0.0
    %940 = vmatpush1.msra.mxu0 %v857
    %941 = vmatprep.subr.mxu0 0.0
    %942 = vmatpush1.msra.mxu0 %v856
    %943 = vmatprep.subr.mxu0 0.0
    %944 = vmatpush1.msra.mxu0 %v855
    %945 = vmatprep.subr.mxu0 0.0
    %946 = vmatpush2.msra.mxu0 0.0
    %947 = vmatprep.subr.mxu0 0.0
    %948 = vmatpush2.msra.mxu0 0.0
    %949 = vmatprep.subr.mxu0 0.0
    %950 = vmatpush2.msra.mxu0 0.0
    %951 = vmatprep.subr.mxu0 0.0
    %952 = vmatpush2.msra.mxu0 0.0
    %953 = vmatprep.subr.mxu0 0.0
    %954 = vmatpush2.msra.mxu0 0.0
    %955 = vmatprep.subr.mxu0 0.0
    %956 = vmatpush2.msra.mxu0 0.0
    %957 = vmatprep.subr.mxu0 0.0
    %958 = vmatpush2.msra.mxu0 0.0
    %959 = vmatprep.subr.mxu0 0.0
    %960 = vmatpush2.msra.mxu0 0.0
    %961 = vmatprep.subr.mxu0 0.0
    %962 = vmatpush2.msra.mxu0 0.0
    %963 = vmatprep.subr.mxu0 0.0
    %964 = vmatpush2.msra.mxu0 0.0
    %965 = vmatprep.subr.mxu0 0.0
    %966 = vmatpush2.msra.mxu0 0.0
    %967 = vmatprep.subr.mxu0 0.0
    %968 = vmatpush2.msra.mxu0 0.0
    %969 = vmatprep.subr.mxu0 0.0
    %970 = vmatpush2.msra.mxu0 0.0
    %971 = vmatprep.subr.mxu0 0.0
    %972 = vmatpush2.msra.mxu0 0.0
    %973 = vmatprep.subr.mxu0 0.0
    %974 = vmatpush2.msra.mxu0 0.0
    %975 = vmatprep.subr.mxu0 0.0
    %976 = vmatpush2.msra.mxu0 0.0
    %977 = vmatprep.mubr.f32.mxu0 0.0
    %978 = vmatmul.mubr.f32.gmra.mxu0 %v866
    %v979 = vpop.f32.mrf.mxu0
    %v980 = vadd.f32 0.0, %v979
    %v981 = vpop.f32.mrf.mxu0
    %982 = vmatprep.mubr.f32.mxu0 0.0
    %983 = vmatmul.mubr.f32.gmra.mxu0 %v869
    %v984 = vpop.f32.mrf.mxu0
    %v985 = vadd.f32 0.0, %v984
    %v986 = vpop.f32.mrf.mxu0
    %987 = vmatprep.mubr.f32.mxu0 0.0
    %988 = vmatmul.mubr.f32.gmra.mxu0 %v872
    %v989 = vpop.f32.mrf.mxu0
    %v990 = vadd.f32 0.0, %v989
    %v991 = vpop.f32.mrf.mxu0
    %992 = vmatprep.mubr.f32.mxu0 0.0
    %993 = vmatmul.mubr.f32.gmra.mxu0 %v875
    %v994 = vpop.f32.mrf.mxu0
    %v995 = vadd.f32 0.0, %v994
    %v996 = vpop.f32.mrf.mxu0
    %997 = vmatprep.mubr.f32.mxu0 0.0
    %998 = vmatmul.mubr.f32.gmra.mxu0 %v878
    %v999 = vpop.f32.mrf.mxu0
    %v1000 = vadd.f32 0.0, %v999
    %v1001 = vpop.f32.mrf.mxu0
    %1002 = vmatprep.mubr.f32.mxu0 0.0
    %1003 = vmatmul.mubr.f32.gmra.mxu0 %v881
    %v1004 = vpop.f32.mrf.mxu0
    %v1005 = vadd.f32 0.0, %v1004
    %v1006 = vpop.f32.mrf.mxu0
    %1007 = vmatprep.mubr.f32.mxu0 0.0
    %1008 = vmatmul.mubr.f32.gmra.mxu0 %v884
    %v1009 = vpop.f32.mrf.mxu0
    %v1010 = vadd.f32 0.0, %v1009
    %v1011 = vpop.f32.mrf.mxu0
    %1012 = vmatprep.mubr.f32.mxu0 0.0
    %1013 = vmatmul.mubr.f32.gmra.mxu0 %v887
    %v1014 = vpop.f32.mrf.mxu0
    %v1015 = vadd.f32 0.0, %v1014
    %v1016 = vpop.f32.mrf.mxu0
    %1017 = vmatprep.mubr.f32.mxu0 0.0
    %1018 = vmatmul.mubr.f32.gmra.mxu0 %v890
    %v1019 = vpop.f32.mrf.mxu0
    %v1020 = vadd.f32 0.0, %v1019
    %v1021 = vpop.f32.mrf.mxu0
    %1022 = vmatprep.mubr.f32.mxu0 0.0
    %1023 = vmatmul.mubr.f32.gmra.mxu0 %v893
    %v1024 = vpop.f32.mrf.mxu0
    %v1025 = vadd.f32 0.0, %v1024
    %v1026 = vpop.f32.mrf.mxu0
    %1027 = vmatprep.mubr.f32.mxu0 0.0
    %1028 = vmatmul.mubr.f32.gmra.mxu0 %v896
    %v1029 = vpop.f32.mrf.mxu0
    %v1030 = vadd.f32 0.0, %v1029
    %v1031 = vpop.f32.mrf.mxu0
    %1032 = vmatprep.mubr.f32.mxu0 0.0
    %1033 = vmatmul.mubr.f32.gmra.mxu0 %v899
    %v1034 = vpop.f32.mrf.mxu0
    %v1035 = vadd.f32 0.0, %v1034
    %v1036 = vpop.f32.mrf.mxu0
    %1037 = vmatprep.mubr.f32.mxu0 0.0
    %1038 = vmatmul.mubr.f32.gmra.mxu0 %v902
    %v1039 = vpop.f32.mrf.mxu0
    %v1040 = vadd.f32 0.0, %v1039
    %v1041 = vpop.f32.mrf.mxu0
    %1042 = vmatprep.mubr.f32.mxu0 0.0
    %1043 = vmatmul.mubr.f32.gmra.mxu0 %v905
    %v1044 = vpop.f32.mrf.mxu0
    %v1045 = vadd.f32 0.0, %v1044
    %v1046 = vpop.f32.mrf.mxu0
    %1047 = vmatprep.mubr.f32.mxu0 0.0
    %1048 = vmatmul.mubr.f32.gmra.mxu0 %v908
    %v1049 = vpop.f32.mrf.mxu0
    %v1050 = vadd.f32 0.0, %v1049
    %v1051 = vpop.f32.mrf.mxu0
    %1052 = vmatprep.mubr.f32.mxu0 0.0
    %1053 = vmatmul.mubr.f32.gmra.mxu0 %v911
    %v1054 = vpop.f32.mrf.mxu0
    %v1055 = vadd.f32 0.0, %v1054
    %v1056 = vpop.f32.mrf.mxu0
    %1057 = vdwg.mxu0
    %1059 = vset.pattern.permute.xlu0 0
    %1060 = vperm.xlu0 %1059, %v58
    %v1061 = vpop.permute.xlu0 %1060
    %1064 = vset.pattern.permute.xlu0 0
    %1065 = vperm.xlu0 %1064, %v59
    %v1066 = vpop.permute.xlu0 %1065
    %1069 = vset.pattern.permute.xlu0 0
    %1070 = vperm.xlu0 %1069, %v60
    %v1071 = vpop.permute.xlu0 %1070
    %1074 = vset.pattern.permute.xlu0 0
    %1075 = vperm.xlu0 %1074, %v61
    %v1076 = vpop.permute.xlu0 %1075
    %1079 = vset.pattern.permute.xlu0 0
    %1080 = vperm.xlu0 %1079, %v62
    %v1081 = vpop.permute.xlu0 %1080
    %1084 = vset.pattern.permute.xlu0 0
    %1085 = vperm.xlu0 %1084, %v63
    %v1086 = vpop.permute.xlu0 %1085
    %1089 = vset.pattern.permute.xlu0 0
    %1090 = vperm.xlu0 %1089, %v64
    %v1091 = vpop.permute.xlu0 %1090
    %1094 = vset.pattern.permute.xlu0 0
    %1095 = vperm.xlu0 %1094, %v65
    %v1096 = vpop.permute.xlu0 %1095
    %1099 = vset.pattern.permute.xlu0 0
    %1100 = vperm.xlu0 %1099, %v66
    %v1101 = vpop.permute.xlu0 %1100
    %1104 = vset.pattern.permute.xlu0 0
    %1105 = vperm.xlu0 %1104, %v67
    %v1106 = vpop.permute.xlu0 %1105
    %1109 = vset.pattern.permute.xlu0 0
    %1110 = vperm.xlu0 %1109, %v68
    %v1111 = vpop.permute.xlu0 %1110
    %1114 = vset.pattern.permute.xlu0 0
    %1115 = vperm.xlu0 %1114, %v69
    %v1116 = vpop.permute.xlu0 %1115
    %1119 = vset.pattern.permute.xlu0 0
    %1120 = vperm.xlu0 %1119, %v70
    %v1121 = vpop.permute.xlu0 %1120
    %1124 = vset.pattern.permute.xlu0 0
    %1125 = vperm.xlu0 %1124, %v71
    %v1126 = vpop.permute.xlu0 %1125
    %1129 = vset.pattern.permute.xlu0 0
    %1130 = vperm.xlu0 %1129, %v72
    %v1131 = vpop.permute.xlu0 %1130
    %1134 = vset.pattern.permute.xlu0 0
    %1135 = vperm.xlu0 %1134, %v73
    %v1136 = vpop.permute.xlu0 %1135
    %v1138 = vmul.f32 %v980, %v1061
    %v1139 = vmul.f32 %v985, %v1066
    %v1140 = vmul.f32 %v990, %v1071
    %v1141 = vmul.f32 %v995, %v1076
    %v1142 = vmul.f32 %v1000, %v1081
    %v1143 = vmul.f32 %v1005, %v1086
    %v1144 = vmul.f32 %v1010, %v1091
    %v1145 = vmul.f32 %v1015, %v1096
    %v1146 = vmul.f32 %v1020, %v1101
    %v1147 = vmul.f32 %v1025, %v1106
    %v1148 = vmul.f32 %v1030, %v1111
    %v1149 = vmul.f32 %v1035, %v1116
    %v1150 = vmul.f32 %v1040, %v1121
    %v1151 = vmul.f32 %v1045, %v1126
    %v1152 = vmul.f32 %v1050, %v1131
    %v1153 = vmul.f32 %v1055, %v1136
    %v1155 = vlaneseq
    %v1156 = vshrl.u32 %v1155, 7
    %v1157 = vsub.s32 0, %v1156
    %v1158 = vrot.slane %v74, %v1157
    %v1160 = vadd.f32 %v1138, %v1158
    %v1161 = vadd.f32 %v1139, %v1158
    %v1162 = vadd.f32 %v1140, %v1158
    %v1163 = vadd.f32 %v1141, %v1158
    %v1164 = vadd.f32 %v1142, %v1158
    %v1165 = vadd.f32 %v1143, %v1158
    %v1166 = vadd.f32 %v1144, %v1158
    %v1167 = vadd.f32 %v1145, %v1158
    %v1168 = vadd.f32 %v1146, %v1158
    %v1169 = vadd.f32 %v1147, %v1158
    %v1170 = vadd.f32 %v1148, %v1158
    %v1171 = vadd.f32 %v1149, %v1158
    %v1172 = vadd.f32 %v1150, %v1158
    %v1173 = vadd.f32 %v1151, %v1158
    %v1174 = vadd.f32 %v1152, %v1158
    %v1175 = vadd.f32 %v1153, %v1158
    %v1176 = vmul.f32 %v1160, %v1061
    %v1177 = vmul.f32 %v1161, %v1066
    %v1178 = vmul.f32 %v1162, %v1071
    %v1179 = vmul.f32 %v1163, %v1076
    %v1180 = vmul.f32 %v1164, %v1081
    %v1181 = vmul.f32 %v1165, %v1086
    %v1182 = vmul.f32 %v1166, %v1091
    %v1183 = vmul.f32 %v1167, %v1096
    %v1184 = vmul.f32 %v1168, %v1101
    %v1185 = vmul.f32 %v1169, %v1106
    %v1186 = vmul.f32 %v1170, %v1111
    %v1187 = vmul.f32 %v1171, %v1116
    %v1188 = vmul.f32 %v1172, %v1121
    %v1189 = vmul.f32 %v1173, %v1126
    %v1190 = vmul.f32 %v1174, %v1131
    %v1191 = vmul.f32 %v1175, %v1136
    %v1192 = vmax.f32 %v1176, 0.0
    %v1193 = vmax.f32 %v1177, 0.0
    %v1194 = vmax.f32 %v1178, 0.0
    %v1195 = vmax.f32 %v1179, 0.0
    %v1196 = vmax.f32 %v1180, 0.0
    %v1197 = vmax.f32 %v1181, 0.0
    %v1198 = vmax.f32 %v1182, 0.0
    %v1199 = vmax.f32 %v1183, 0.0
    %v1200 = vmax.f32 %v1184, 0.0
    %v1201 = vmax.f32 %v1185, 0.0
    %v1202 = vmax.f32 %v1186, 0.0
    %v1203 = vmax.f32 %v1187, 0.0
    %v1204 = vmax.f32 %v1188, 0.0
    %v1205 = vmax.f32 %v1189, 0.0
    %v1206 = vmax.f32 %v1190, 0.0
    %v1207 = vmax.f32 %v1191, 0.0
    %v1208 = vld [vmem:[%s5] sm:$0x1]
    %1209 = vst.msk [vmem:[#allocation2] sm:$0xff] %vm75, 0.0
    %1210 = vst.msk [vmem:[#allocation2 + $0x8] sm:$0x3] %vm77, 0.0
    %1211 = vst.msk [vmem:[#allocation2 + $0x10] sm:$0xff] %vm75, 0.0
    %1212 = vst.msk [vmem:[#allocation2 + $0x18] sm:$0x3] %vm77, 0.0
    %1213 = vst.msk [vmem:[#allocation2 + $0x20] sm:$0xff] %vm75, 0.0
    %1214 = vst.msk [vmem:[#allocation2 + $0x28] sm:$0x3] %vm77, 0.0
    %1215 = vst.msk [vmem:[#allocation2 + $0x30] sm:$0xff] %vm75, 0.0
    %1216 = vst.msk [vmem:[#allocation2 + $0x38] sm:$0x3] %vm77, 0.0
    %1217 = vst.msk [vmem:[#allocation2 + $0x40] sm:$0xff] %vm75, 0.0
    %1218 = vst.msk [vmem:[#allocation2 + $0x48] sm:$0x3] %vm77, 0.0
    %1219 = vst.msk [vmem:[#allocation2 + $0x50] sm:$0xff] %vm75, 0.0
    %1220 = vst.msk [vmem:[#allocation2 + $0x58] sm:$0x3] %vm77, 0.0
    %1221 = vst.msk [vmem:[#allocation2 + $0x60] sm:$0xff] %vm75, 0.0
    %1222 = vst.msk [vmem:[#allocation2 + $0x68] sm:$0x3] %vm77, 0.0
    %1223 = vst.msk [vmem:[#allocation2 + $0x70] sm:$0xff] %vm75, 0.0
    %1224 = vst.msk [vmem:[#allocation2 + $0x78] sm:$0x3] %vm77, 0.0
    %1225 = vst.msk [vmem:[#allocation2 + $0x80] sm:$0xff] %vm75, 0.0
    %1226 = vst.msk [vmem:[#allocation2 + $0x88] sm:$0x3] %vm77, 0.0
    %1227 = vst.msk [vmem:[#allocation2 + $0x90] sm:$0xff] %vm75, 0.0
    %1228 = vst.msk [vmem:[#allocation2 + $0x98] sm:$0x3] %vm77, 0.0
    %1229 = vst.msk [vmem:[#allocation2 + $0xa0] sm:$0xff] %vm75, 0.0
    %1230 = vst.msk [vmem:[#allocation2 + $0xa8] sm:$0x3] %vm77, 0.0
    %1231 = vst.msk [vmem:[#allocation2 + $0xb0] sm:$0xff] %vm75, 0.0
    %1232 = vst.msk [vmem:[#allocation2 + $0xb8] sm:$0x3] %vm77, 0.0
    %1233 = vst.msk [vmem:[#allocation2 + $0xc0] sm:$0xff] %vm75, 0.0
    %1234 = vst.msk [vmem:[#allocation2 + $0xc8] sm:$0x3] %vm77, 0.0
    %1235 = vst.msk [vmem:[#allocation2 + $0xd0] sm:$0xff] %vm75, 0.0
    %1236 = vst.msk [vmem:[#allocation2 + $0xd8] sm:$0x3] %vm77, 0.0
    %1237 = vst.msk [vmem:[#allocation2 + $0xe0] sm:$0xff] %vm75, 0.0
    %1238 = vst.msk [vmem:[#allocation2 + $0xe8] sm:$0x3] %vm77, 0.0
    %1239 = vst.msk [vmem:[#allocation2 + $0xf0] sm:$0xff] %vm75, 0.0
    %1240 = vst.msk [vmem:[#allocation2 + $0xf8] sm:$0x3] %vm77, 0.0
    %1241 = vst.msk [vmem:[#allocation2 + $0x100] sm:$0xff] %vm75, 0.0
    %1242 = vst.msk [vmem:[#allocation2 + $0x108] sm:$0x3] %vm77, 0.0
    %1243 = vst.msk [vmem:[#allocation2 + $0x110] sm:$0xff] %vm75, 0.0
    %1244 = vst.msk [vmem:[#allocation2 + $0x118] sm:$0x3] %vm77, 0.0
    %1245 = vst.msk [vmem:[#allocation2 + $0x120] sm:$0xff] %vm75, 0.0
    %1246 = vst.msk [vmem:[#allocation2 + $0x128] sm:$0x3] %vm77, 0.0
    %1247 = vst.msk [vmem:[#allocation2 + $0x130] sm:$0xff] %vm75, 0.0
    %1248 = vst.msk [vmem:[#allocation2 + $0x138] sm:$0x3] %vm77, 0.0
    %1249 = vst.msk [vmem:[%s117 + $0x1] sm:$0xff] %vm75, %v1192
    %1250 = vst.msk [vmem:[%s117 + $0x11] sm:$0xff] %vm75, %v1193
    %1251 = vst.msk [vmem:[%s117 + $0x21] sm:$0xff] %vm75, %v1194
    %1252 = vst.msk [vmem:[%s117 + $0x31] sm:$0xff] %vm75, %v1195
    %1253 = vst.msk [vmem:[%s117 + $0x41] sm:$0xff] %vm75, %v1196
    %1254 = vst.msk [vmem:[%s117 + $0x51] sm:$0xff] %vm75, %v1197
    %1255 = vst.msk [vmem:[%s117 + $0x61] sm:$0xff] %vm75, %v1198
    %1256 = vst.msk [vmem:[%s117 + $0x71] sm:$0xff] %vm75, %v1199
    %1257 = vst.msk [vmem:[%s117 + $0xa1] sm:$0xff] %vm75, %v1200
    %1258 = vst.msk [vmem:[%s117 + $0xb1] sm:$0xff] %vm75, %v1201
    %1259 = vst.msk [vmem:[%s117 + $0xc1] sm:$0xff] %vm75, %v1202
    %1260 = vst.msk [vmem:[%s117 + $0xd1] sm:$0xff] %vm75, %v1203
    %1261 = vst.msk [vmem:[%s117 + $0xe1] sm:$0xff] %vm75, %v1204
    %1262 = vst.msk [vmem:[%s117 + $0xf1] sm:$0xff] %vm75, %v1205
    %1263 = vst.msk [vmem:[%s117 + $0x101] sm:$0xff] %vm75, %v1206
    %1264 = vst.msk [vmem:[%s117 + $0x111] sm:$0xff] %vm75, %v1207
    %v1265 = vld [vmem:[#allocation2] sm:$0xff]
    %v1266 = vld [vmem:[#allocation2 + $0x8] sm:$0x3]
    %v1267 = vld [vmem:[#allocation2 + $0x10] sm:$0xff]
    %v1268 = vld [vmem:[#allocation2 + $0x18] sm:$0x3]
    %v1269 = vld [vmem:[#allocation2 + $0x20] sm:$0xff]
    %v1270 = vld [vmem:[#allocation2 + $0x28] sm:$0x3]
    %v1271 = vld [vmem:[#allocation2 + $0x30] sm:$0xff]
    %v1272 = vld [vmem:[#allocation2 + $0x38] sm:$0x3]
    %v1273 = vld [vmem:[#allocation2 + $0x40] sm:$0xff]
    %v1274 = vld [vmem:[#allocation2 + $0x48] sm:$0x3]
    %v1275 = vld [vmem:[#allocation2 + $0x50] sm:$0xff]
    %v1276 = vld [vmem:[#allocation2 + $0x58] sm:$0x3]
    %v1277 = vld [vmem:[#allocation2 + $0x60] sm:$0xff]
    %v1278 = vld [vmem:[#allocation2 + $0x68] sm:$0x3]
    %v1279 = vld [vmem:[#allocation2 + $0x70] sm:$0xff]
    %v1280 = vld [vmem:[#allocation2 + $0x78] sm:$0x3]
    %v1281 = vld [vmem:[#allocation2 + $0x80] sm:$0xff]
    %v1282 = vld [vmem:[#allocation2 + $0x88] sm:$0x3]
    %v1283 = vld [vmem:[#allocation2 + $0x90] sm:$0xff]
    %v1284 = vld [vmem:[#allocation2 + $0x98] sm:$0x3]
    %v1285 = vld [vmem:[#allocation2 + $0xa0] sm:$0xff]
    %v1286 = vld [vmem:[#allocation2 + $0xa8] sm:$0x3]
    %v1287 = vld [vmem:[#allocation2 + $0xb0] sm:$0xff]
    %v1288 = vld [vmem:[#allocation2 + $0xb8] sm:$0x3]
    %v1289 = vld [vmem:[#allocation2 + $0xc0] sm:$0xff]
    %v1290 = vld [vmem:[#allocation2 + $0xc8] sm:$0x3]
    %v1291 = vld [vmem:[#allocation2 + $0xd0] sm:$0xff]
    %v1292 = vld [vmem:[#allocation2 + $0xd8] sm:$0x3]
    %v1293 = vld [vmem:[#allocation2 + $0xe0] sm:$0xff]
    %v1294 = vld [vmem:[#allocation2 + $0xe8] sm:$0x3]
    %v1295 = vld [vmem:[#allocation2 + $0xf0] sm:$0xff]
    %v1296 = vld [vmem:[#allocation2 + $0xf8] sm:$0x3]
    %v1297 = vld [vmem:[#allocation2 + $0x100] sm:$0xff]
    %v1298 = vld [vmem:[#allocation2 + $0x108] sm:$0x3]
    %v1299 = vld [vmem:[#allocation2 + $0x110] sm:$0xff]
    %v1300 = vld [vmem:[#allocation2 + $0x118] sm:$0x3]
    %v1301 = vld [vmem:[#allocation2 + $0x120] sm:$0xff]
    %v1302 = vld [vmem:[#allocation2 + $0x128] sm:$0x3]
    %v1303 = vld [vmem:[#allocation2 + $0x130] sm:$0xff]
    %v1304 = vld [vmem:[#allocation2 + $0x138] sm:$0x3]
    %v1337 = vrot.slane %v1265, 1
    %v1338 = vrot.slane %v1266, 1
    %v1339 = vsel %vm206, %v1337, %v1338
    %v1340 = vrot.slane %v1267, 1
    %v1341 = vrot.slane %v1268, 1
    %v1342 = vsel %vm206, %v1340, %v1341
    %v1343 = vrot.slane %v1269, 1
    %v1344 = vrot.slane %v1270, 1
    %v1345 = vsel %vm206, %v1343, %v1344
    %v1346 = vrot.slane %v1271, 1
    %v1347 = vrot.slane %v1272, 1
    %v1348 = vsel %vm206, %v1346, %v1347
    %v1349 = vrot.slane %v1273, 1
    %v1350 = vrot.slane %v1274, 1
    %v1351 = vsel %vm206, %v1349, %v1350
    %v1352 = vrot.slane %v1275, 1
    %v1353 = vrot.slane %v1276, 1
    %v1354 = vsel %vm206, %v1352, %v1353
    %v1355 = vrot.slane %v1277, 1
    %v1356 = vrot.slane %v1278, 1
    %v1357 = vsel %vm206, %v1355, %v1356
    %v1358 = vrot.slane %v1279, 1
    %v1359 = vrot.slane %v1280, 1
    %v1360 = vsel %vm206, %v1358, %v1359
    %v1361 = vrot.slane %v1285, 1
    %v1362 = vrot.slane %v1286, 1
    %v1363 = vsel %vm206, %v1361, %v1362
    %v1364 = vrot.slane %v1287, 1
    %v1365 = vrot.slane %v1288, 1
    %v1366 = vsel %vm206, %v1364, %v1365
    %v1367 = vrot.slane %v1289, 1
    %v1368 = vrot.slane %v1290, 1
    %v1369 = vsel %vm206, %v1367, %v1368
    %v1370 = vrot.slane %v1291, 1
    %v1371 = vrot.slane %v1292, 1
    %v1372 = vsel %vm206, %v1370, %v1371
    %v1373 = vrot.slane %v1293, 1
    %v1374 = vrot.slane %v1294, 1
    %v1375 = vsel %vm206, %v1373, %v1374
    %v1376 = vrot.slane %v1295, 1
    %v1377 = vrot.slane %v1296, 1
    %v1378 = vsel %vm206, %v1376, %v1377
    %v1379 = vrot.slane %v1297, 1
    %v1380 = vrot.slane %v1298, 1
    %v1381 = vsel %vm206, %v1379, %v1380
    %v1382 = vrot.slane %v1299, 1
    %v1383 = vrot.slane %v1300, 1
    %v1384 = vsel %vm206, %v1382, %v1383
    %v1385 = vrot.slane %v1265, 2
    %v1386 = vrot.slane %v1266, 2
    %v1387 = vsel %vm255, %v1385, %v1386
    %v1388 = vrot.slane %v1267, 2
    %v1389 = vrot.slane %v1268, 2
    %v1390 = vsel %vm255, %v1388, %v1389
    %v1391 = vrot.slane %v1269, 2
    %v1392 = vrot.slane %v1270, 2
    %v1393 = vsel %vm255, %v1391, %v1392
    %v1394 = vrot.slane %v1271, 2
    %v1395 = vrot.slane %v1272, 2
    %v1396 = vsel %vm255, %v1394, %v1395
    %v1397 = vrot.slane %v1273, 2
    %v1398 = vrot.slane %v1274, 2
    %v1399 = vsel %vm255, %v1397, %v1398
    %v1400 = vrot.slane %v1275, 2
    %v1401 = vrot.slane %v1276, 2
    %v1402 = vsel %vm255, %v1400, %v1401
    %v1403 = vrot.slane %v1277, 2
    %v1404 = vrot.slane %v1278, 2
    %v1405 = vsel %vm255, %v1403, %v1404
    %v1406 = vrot.slane %v1279, 2
    %v1407 = vrot.slane %v1280, 2
    %v1408 = vsel %vm255, %v1406, %v1407
    %v1409 = vrot.slane %v1285, 2
    %v1410 = vrot.slane %v1286, 2
    %v1411 = vsel %vm255, %v1409, %v1410
    %v1412 = vrot.slane %v1287, 2
    %v1413 = vrot.slane %v1288, 2
    %v1414 = vsel %vm255, %v1412, %v1413
    %v1415 = vrot.slane %v1289, 2
    %v1416 = vrot.slane %v1290, 2
    %v1417 = vsel %vm255, %v1415, %v1416
    %v1418 = vrot.slane %v1291, 2
    %v1419 = vrot.slane %v1292, 2
    %v1420 = vsel %vm255, %v1418, %v1419
    %v1421 = vrot.slane %v1293, 2
    %v1422 = vrot.slane %v1294, 2
    %v1423 = vsel %vm255, %v1421, %v1422
    %v1424 = vrot.slane %v1295, 2
    %v1425 = vrot.slane %v1296, 2
    %v1426 = vsel %vm255, %v1424, %v1425
    %v1427 = vrot.slane %v1297, 2
    %v1428 = vrot.slane %v1298, 2
    %v1429 = vsel %vm255, %v1427, %v1428
    %v1430 = vrot.slane %v1299, 2
    %v1431 = vrot.slane %v1300, 2
    %v1432 = vsel %vm255, %v1430, %v1431
    %v1437 = vrot.slane %v1281, 1
    %v1438 = vrot.slane %v1282, 1
    %v1439 = vsel %vm206, %v1437, %v1438
    %v1440 = vrot.slane %v1301, 1
    %v1441 = vrot.slane %v1302, 1
    %v1442 = vsel %vm206, %v1440, %v1441
    %v1443 = vrot.slane %v1281, 2
    %v1444 = vrot.slane %v1282, 2
    %v1445 = vsel %vm255, %v1443, %v1444
    %v1446 = vrot.slane %v1301, 2
    %v1447 = vrot.slane %v1302, 2
    %v1448 = vsel %vm255, %v1446, %v1447
    %v1453 = vrot.slane %v1283, 1
    %v1454 = vrot.slane %v1284, 1
    %v1455 = vsel %vm206, %v1453, %v1454
    %v1456 = vrot.slane %v1303, 1
    %v1457 = vrot.slane %v1304, 1
    %v1458 = vsel %vm206, %v1456, %v1457
    %v1459 = vrot.slane %v1283, 2
    %v1460 = vrot.slane %v1284, 2
    %v1461 = vsel %vm255, %v1459, %v1460
    %v1462 = vrot.slane %v1303, 2
    %v1463 = vrot.slane %v1304, 2
    %v1464 = vsel %vm255, %v1462, %v1463
    %1465 = vrot.lane.b32.xlu0 %v1339, 8
    %v1466 = vpop.permute.xlu0 %1465
    %1467 = vrot.lane.b32.xlu0 %v1342, 8
    %v1468 = vpop.permute.xlu0 %1467
    %1469 = vrot.lane.b32.xlu0 %v1345, 8
    %v1470 = vpop.permute.xlu0 %1469
    %1471 = vrot.lane.b32.xlu0 %v1348, 8
    %v1472 = vpop.permute.xlu0 %1471
    %1473 = vrot.lane.b32.xlu0 %v1351, 8
    %v1474 = vpop.permute.xlu0 %1473
    %1475 = vrot.lane.b32.xlu0 %v1354, 8
    %v1476 = vpop.permute.xlu0 %1475
    %1477 = vrot.lane.b32.xlu0 %v1357, 8
    %v1478 = vpop.permute.xlu0 %1477
    %1479 = vrot.lane.b32.xlu0 %v1360, 8
    %v1480 = vpop.permute.xlu0 %1479
    %1481 = vrot.lane.b32.xlu0 %v1363, 8
    %v1482 = vpop.permute.xlu0 %1481
    %1483 = vrot.lane.b32.xlu0 %v1366, 8
    %v1484 = vpop.permute.xlu0 %1483
    %1485 = vrot.lane.b32.xlu0 %v1369, 8
    %v1486 = vpop.permute.xlu0 %1485
    %1487 = vrot.lane.b32.xlu0 %v1372, 8
    %v1488 = vpop.permute.xlu0 %1487
    %1489 = vrot.lane.b32.xlu0 %v1375, 8
    %v1490 = vpop.permute.xlu0 %1489
    %1491 = vrot.lane.b32.xlu0 %v1378, 8
    %v1492 = vpop.permute.xlu0 %1491
    %1493 = vrot.lane.b32.xlu0 %v1381, 8
    %v1494 = vpop.permute.xlu0 %1493
    %1495 = vrot.lane.b32.xlu0 %v1384, 8
    %v1496 = vpop.permute.xlu0 %1495
    %1513 = vrot.lane.b32.xlu0 %v1387, 16
    %v1514 = vpop.permute.xlu0 %1513
    %1515 = vrot.lane.b32.xlu0 %v1390, 16
    %v1516 = vpop.permute.xlu0 %1515
    %1517 = vrot.lane.b32.xlu0 %v1393, 16
    %v1518 = vpop.permute.xlu0 %1517
    %1519 = vrot.lane.b32.xlu0 %v1396, 16
    %v1520 = vpop.permute.xlu0 %1519
    %1521 = vrot.lane.b32.xlu0 %v1399, 16
    %v1522 = vpop.permute.xlu0 %1521
    %1523 = vrot.lane.b32.xlu0 %v1402, 16
    %v1524 = vpop.permute.xlu0 %1523
    %1525 = vrot.lane.b32.xlu0 %v1405, 16
    %v1526 = vpop.permute.xlu0 %1525
    %1527 = vrot.lane.b32.xlu0 %v1408, 16
    %v1528 = vpop.permute.xlu0 %1527
    %1529 = vrot.lane.b32.xlu0 %v1411, 16
    %v1530 = vpop.permute.xlu0 %1529
    %1531 = vrot.lane.b32.xlu0 %v1414, 16
    %v1532 = vpop.permute.xlu0 %1531
    %1533 = vrot.lane.b32.xlu0 %v1417, 16
    %v1534 = vpop.permute.xlu0 %1533
    %1535 = vrot.lane.b32.xlu0 %v1420, 16
    %v1536 = vpop.permute.xlu0 %1535
    %1537 = vrot.lane.b32.xlu0 %v1423, 16
    %v1538 = vpop.permute.xlu0 %1537
    %1539 = vrot.lane.b32.xlu0 %v1426, 16
    %v1540 = vpop.permute.xlu0 %1539
    %1541 = vrot.lane.b32.xlu0 %v1429, 16
    %v1542 = vpop.permute.xlu0 %1541
    %1543 = vrot.lane.b32.xlu0 %v1432, 16
    %v1544 = vpop.permute.xlu0 %1543
    %1561 = vrot.lane.b32.xlu0 %v1267, 24
    %v1562 = vpop.permute.xlu0 %1561
    %1563 = vrot.lane.b32.xlu0 %v1269, 24
    %v1564 = vpop.permute.xlu0 %1563
    %1565 = vrot.lane.b32.xlu0 %v1271, 24
    %v1566 = vpop.permute.xlu0 %1565
    %1567 = vrot.lane.b32.xlu0 %v1273, 24
    %v1568 = vpop.permute.xlu0 %1567
    %1569 = vrot.lane.b32.xlu0 %v1275, 24
    %v1570 = vpop.permute.xlu0 %1569
    %1571 = vrot.lane.b32.xlu0 %v1277, 24
    %v1572 = vpop.permute.xlu0 %1571
    %1573 = vrot.lane.b32.xlu0 %v1279, 24
    %v1574 = vpop.permute.xlu0 %1573
    %1575 = vrot.lane.b32.xlu0 %v1281, 24
    %v1576 = vpop.permute.xlu0 %1575
    %1577 = vrot.lane.b32.xlu0 %v1287, 24
    %v1578 = vpop.permute.xlu0 %1577
    %1579 = vrot.lane.b32.xlu0 %v1289, 24
    %v1580 = vpop.permute.xlu0 %1579
    %1581 = vrot.lane.b32.xlu0 %v1291, 24
    %v1582 = vpop.permute.xlu0 %1581
    %1583 = vrot.lane.b32.xlu0 %v1293, 24
    %v1584 = vpop.permute.xlu0 %1583
    %1585 = vrot.lane.b32.xlu0 %v1295, 24
    %v1586 = vpop.permute.xlu0 %1585
    %1587 = vrot.lane.b32.xlu0 %v1297, 24
    %v1588 = vpop.permute.xlu0 %1587
    %1589 = vrot.lane.b32.xlu0 %v1299, 24
    %v1590 = vpop.permute.xlu0 %1589
    %1591 = vrot.lane.b32.xlu0 %v1301, 24
    %v1592 = vpop.permute.xlu0 %1591
    %1609 = vrot.lane.b32.xlu0 %v1342, 32
    %v1610 = vpop.permute.xlu0 %1609
    %1611 = vrot.lane.b32.xlu0 %v1345, 32
    %v1612 = vpop.permute.xlu0 %1611
    %1613 = vrot.lane.b32.xlu0 %v1348, 32
    %v1614 = vpop.permute.xlu0 %1613
    %1615 = vrot.lane.b32.xlu0 %v1351, 32
    %v1616 = vpop.permute.xlu0 %1615
    %1617 = vrot.lane.b32.xlu0 %v1354, 32
    %v1618 = vpop.permute.xlu0 %1617
    %1619 = vrot.lane.b32.xlu0 %v1357, 32
    %v1620 = vpop.permute.xlu0 %1619
    %1621 = vrot.lane.b32.xlu0 %v1360, 32
    %v1622 = vpop.permute.xlu0 %1621
    %1623 = vrot.lane.b32.xlu0 %v1439, 32
    %v1624 = vpop.permute.xlu0 %1623
    %1625 = vrot.lane.b32.xlu0 %v1366, 32
    %v1626 = vpop.permute.xlu0 %1625
    %1627 = vrot.lane.b32.xlu0 %v1369, 32
    %v1628 = vpop.permute.xlu0 %1627
    %1629 = vrot.lane.b32.xlu0 %v1372, 32
    %v1630 = vpop.permute.xlu0 %1629
    %1631 = vrot.lane.b32.xlu0 %v1375, 32
    %v1632 = vpop.permute.xlu0 %1631
    %1633 = vrot.lane.b32.xlu0 %v1378, 32
    %v1634 = vpop.permute.xlu0 %1633
    %1635 = vrot.lane.b32.xlu0 %v1381, 32
    %v1636 = vpop.permute.xlu0 %1635
    %1637 = vrot.lane.b32.xlu0 %v1384, 32
    %v1638 = vpop.permute.xlu0 %1637
    %1639 = vrot.lane.b32.xlu0 %v1442, 32
    %v1640 = vpop.permute.xlu0 %1639
    %1657 = vrot.lane.b32.xlu0 %v1390, 40
    %v1658 = vpop.permute.xlu0 %1657
    %1659 = vrot.lane.b32.xlu0 %v1393, 40
    %v1660 = vpop.permute.xlu0 %1659
    %1661 = vrot.lane.b32.xlu0 %v1396, 40
    %v1662 = vpop.permute.xlu0 %1661
    %1663 = vrot.lane.b32.xlu0 %v1399, 40
    %v1664 = vpop.permute.xlu0 %1663
    %1665 = vrot.lane.b32.xlu0 %v1402, 40
    %v1666 = vpop.permute.xlu0 %1665
    %1667 = vrot.lane.b32.xlu0 %v1405, 40
    %v1668 = vpop.permute.xlu0 %1667
    %1669 = vrot.lane.b32.xlu0 %v1408, 40
    %v1670 = vpop.permute.xlu0 %1669
    %1671 = vrot.lane.b32.xlu0 %v1445, 40
    %v1672 = vpop.permute.xlu0 %1671
    %1673 = vrot.lane.b32.xlu0 %v1414, 40
    %v1674 = vpop.permute.xlu0 %1673
    %1675 = vrot.lane.b32.xlu0 %v1417, 40
    %v1676 = vpop.permute.xlu0 %1675
    %1677 = vrot.lane.b32.xlu0 %v1420, 40
    %v1678 = vpop.permute.xlu0 %1677
    %1679 = vrot.lane.b32.xlu0 %v1423, 40
    %v1680 = vpop.permute.xlu0 %1679
    %1681 = vrot.lane.b32.xlu0 %v1426, 40
    %v1682 = vpop.permute.xlu0 %1681
    %1683 = vrot.lane.b32.xlu0 %v1429, 40
    %v1684 = vpop.permute.xlu0 %1683
    %1685 = vrot.lane.b32.xlu0 %v1432, 40
    %v1686 = vpop.permute.xlu0 %1685
    %1687 = vrot.lane.b32.xlu0 %v1448, 40
    %v1688 = vpop.permute.xlu0 %1687
    %1705 = vrot.lane.b32.xlu0 %v1269, 48
    %v1706 = vpop.permute.xlu0 %1705
    %1707 = vrot.lane.b32.xlu0 %v1271, 48
    %v1708 = vpop.permute.xlu0 %1707
    %1709 = vrot.lane.b32.xlu0 %v1273, 48
    %v1710 = vpop.permute.xlu0 %1709
    %1711 = vrot.lane.b32.xlu0 %v1275, 48
    %v1712 = vpop.permute.xlu0 %1711
    %1713 = vrot.lane.b32.xlu0 %v1277, 48
    %v1714 = vpop.permute.xlu0 %1713
    %1715 = vrot.lane.b32.xlu0 %v1279, 48
    %v1716 = vpop.permute.xlu0 %1715
    %1717 = vrot.lane.b32.xlu0 %v1281, 48
    %v1718 = vpop.permute.xlu0 %1717
    %1719 = vrot.lane.b32.xlu0 %v1283, 48
    %v1720 = vpop.permute.xlu0 %1719
    %1721 = vrot.lane.b32.xlu0 %v1289, 48
    %v1722 = vpop.permute.xlu0 %1721
    %1723 = vrot.lane.b32.xlu0 %v1291, 48
    %v1724 = vpop.permute.xlu0 %1723
    %1725 = vrot.lane.b32.xlu0 %v1293, 48
    %v1726 = vpop.permute.xlu0 %1725
    %1727 = vrot.lane.b32.xlu0 %v1295, 48
    %v1728 = vpop.permute.xlu0 %1727
    %1729 = vrot.lane.b32.xlu0 %v1297, 48
    %v1730 = vpop.permute.xlu0 %1729
    %1731 = vrot.lane.b32.xlu0 %v1299, 48
    %v1732 = vpop.permute.xlu0 %1731
    %1733 = vrot.lane.b32.xlu0 %v1301, 48
    %v1734 = vpop.permute.xlu0 %1733
    %1735 = vrot.lane.b32.xlu0 %v1303, 48
    %v1736 = vpop.permute.xlu0 %1735
    %1753 = vrot.lane.b32.xlu0 %v1345, 56
    %v1754 = vpop.permute.xlu0 %1753
    %1755 = vrot.lane.b32.xlu0 %v1348, 56
    %v1756 = vpop.permute.xlu0 %1755
    %1757 = vrot.lane.b32.xlu0 %v1351, 56
    %v1758 = vpop.permute.xlu0 %1757
    %1759 = vrot.lane.b32.xlu0 %v1354, 56
    %v1760 = vpop.permute.xlu0 %1759
    %1761 = vrot.lane.b32.xlu0 %v1357, 56
    %v1762 = vpop.permute.xlu0 %1761
    %1763 = vrot.lane.b32.xlu0 %v1360, 56
    %v1764 = vpop.permute.xlu0 %1763
    %1765 = vrot.lane.b32.xlu0 %v1439, 56
    %v1766 = vpop.permute.xlu0 %1765
    %1767 = vrot.lane.b32.xlu0 %v1455, 56
    %v1768 = vpop.permute.xlu0 %1767
    %1769 = vrot.lane.b32.xlu0 %v1369, 56
    %v1770 = vpop.permute.xlu0 %1769
    %1771 = vrot.lane.b32.xlu0 %v1372, 56
    %v1772 = vpop.permute.xlu0 %1771
    %1773 = vrot.lane.b32.xlu0 %v1375, 56
    %v1774 = vpop.permute.xlu0 %1773
    %1775 = vrot.lane.b32.xlu0 %v1378, 56
    %v1776 = vpop.permute.xlu0 %1775
    %1777 = vrot.lane.b32.xlu0 %v1381, 56
    %v1778 = vpop.permute.xlu0 %1777
    %1779 = vrot.lane.b32.xlu0 %v1384, 56
    %v1780 = vpop.permute.xlu0 %1779
    %1781 = vrot.lane.b32.xlu0 %v1442, 56
    %v1782 = vpop.permute.xlu0 %1781
    %1783 = vrot.lane.b32.xlu0 %v1458, 56
    %v1784 = vpop.permute.xlu0 %1783
    %1801 = vrot.lane.b32.xlu0 %v1393, 64
    %v1802 = vpop.permute.xlu0 %1801
    %1803 = vrot.lane.b32.xlu0 %v1396, 64
    %v1804 = vpop.permute.xlu0 %1803
    %1805 = vrot.lane.b32.xlu0 %v1399, 64
    %v1806 = vpop.permute.xlu0 %1805
    %1807 = vrot.lane.b32.xlu0 %v1402, 64
    %v1808 = vpop.permute.xlu0 %1807
    %1809 = vrot.lane.b32.xlu0 %v1405, 64
    %v1810 = vpop.permute.xlu0 %1809
    %1811 = vrot.lane.b32.xlu0 %v1408, 64
    %v1812 = vpop.permute.xlu0 %1811
    %1813 = vrot.lane.b32.xlu0 %v1445, 64
    %v1814 = vpop.permute.xlu0 %1813
    %1815 = vrot.lane.b32.xlu0 %v1461, 64
    %v1816 = vpop.permute.xlu0 %1815
    %1817 = vrot.lane.b32.xlu0 %v1417, 64
    %v1818 = vpop.permute.xlu0 %1817
    %1819 = vrot.lane.b32.xlu0 %v1420, 64
    %v1820 = vpop.permute.xlu0 %1819
    %1821 = vrot.lane.b32.xlu0 %v1423, 64
    %v1822 = vpop.permute.xlu0 %1821
    %1823 = vrot.lane.b32.xlu0 %v1426, 64
    %v1824 = vpop.permute.xlu0 %1823
    %1825 = vrot.lane.b32.xlu0 %v1429, 64
    %v1826 = vpop.permute.xlu0 %1825
    %1827 = vrot.lane.b32.xlu0 %v1432, 64
    %v1828 = vpop.permute.xlu0 %1827
    %1829 = vrot.lane.b32.xlu0 %v1448, 64
    %v1830 = vpop.permute.xlu0 %1829
    %1831 = vrot.lane.b32.xlu0 %v1464, 64
    %v1832 = vpop.permute.xlu0 %1831
    %v1849 = vsel %vm75, %v1265, %v1466
    %v1850 = vsel %vm75, %v1267, %v1468
    %v1851 = vsel %vm75, %v1269, %v1470
    %v1852 = vsel %vm75, %v1271, %v1472
    %v1853 = vsel %vm75, %v1273, %v1474
    %v1854 = vsel %vm75, %v1275, %v1476
    %v1855 = vsel %vm75, %v1277, %v1478
    %v1856 = vsel %vm75, %v1279, %v1480
    %v1857 = vsel %vm75, %v1285, %v1482
    %v1858 = vsel %vm75, %v1287, %v1484
    %v1859 = vsel %vm75, %v1289, %v1486
    %v1860 = vsel %vm75, %v1291, %v1488
    %v1861 = vsel %vm75, %v1293, %v1490
    %v1862 = vsel %vm75, %v1295, %v1492
    %v1863 = vsel %vm75, %v1297, %v1494
    %v1864 = vsel %vm75, %v1299, %v1496
    %v1865 = vsel %vm736, %v1849, %v1514
    %v1866 = vsel %vm736, %v1850, %v1516
    %v1867 = vsel %vm736, %v1851, %v1518
    %v1868 = vsel %vm736, %v1852, %v1520
    %v1869 = vsel %vm736, %v1853, %v1522
    %v1870 = vsel %vm736, %v1854, %v1524
    %v1871 = vsel %vm736, %v1855, %v1526
    %v1872 = vsel %vm736, %v1856, %v1528
    %v1873 = vsel %vm736, %v1857, %v1530
    %v1874 = vsel %vm736, %v1858, %v1532
    %v1875 = vsel %vm736, %v1859, %v1534
    %v1876 = vsel %vm736, %v1860, %v1536
    %v1877 = vsel %vm736, %v1861, %v1538
    %v1878 = vsel %vm736, %v1862, %v1540
    %v1879 = vsel %vm736, %v1863, %v1542
    %v1880 = vsel %vm736, %v1864, %v1544
    %v1881 = vsel %vm753, %v1865, %v1562
    %v1882 = vsel %vm753, %v1866, %v1564
    %v1883 = vsel %vm753, %v1867, %v1566
    %v1884 = vsel %vm753, %v1868, %v1568
    %v1885 = vsel %vm753, %v1869, %v1570
    %v1886 = vsel %vm753, %v1870, %v1572
    %v1887 = vsel %vm753, %v1871, %v1574
    %v1888 = vsel %vm753, %v1872, %v1576
    %v1889 = vsel %vm753, %v1873, %v1578
    %v1890 = vsel %vm753, %v1874, %v1580
    %v1891 = vsel %vm753, %v1875, %v1582
    %v1892 = vsel %vm753, %v1876, %v1584
    %v1893 = vsel %vm753, %v1877, %v1586
    %v1894 = vsel %vm753, %v1878, %v1588
    %v1895 = vsel %vm753, %v1879, %v1590
    %v1896 = vsel %vm753, %v1880, %v1592
    %v1897 = vsel %vm770, %v1881, %v1610
    %v1898 = vsel %vm770, %v1882, %v1612
    %v1899 = vsel %vm770, %v1883, %v1614
    %v1900 = vsel %vm770, %v1884, %v1616
    %v1901 = vsel %vm770, %v1885, %v1618
    %v1902 = vsel %vm770, %v1886, %v1620
    %v1903 = vsel %vm770, %v1887, %v1622
    %v1904 = vsel %vm770, %v1888, %v1624
    %v1905 = vsel %vm770, %v1889, %v1626
    %v1906 = vsel %vm770, %v1890, %v1628
    %v1907 = vsel %vm770, %v1891, %v1630
    %v1908 = vsel %vm770, %v1892, %v1632
    %v1909 = vsel %vm770, %v1893, %v1634
    %v1910 = vsel %vm770, %v1894, %v1636
    %v1911 = vsel %vm770, %v1895, %v1638
    %v1912 = vsel %vm770, %v1896, %v1640
    %v1913 = vsel %vm787, %v1897, %v1658
    %v1914 = vsel %vm787, %v1898, %v1660
    %v1915 = vsel %vm787, %v1899, %v1662
    %v1916 = vsel %vm787, %v1900, %v1664
    %v1917 = vsel %vm787, %v1901, %v1666
    %v1918 = vsel %vm787, %v1902, %v1668
    %v1919 = vsel %vm787, %v1903, %v1670
    %v1920 = vsel %vm787, %v1904, %v1672
    %v1921 = vsel %vm787, %v1905, %v1674
    %v1922 = vsel %vm787, %v1906, %v1676
    %v1923 = vsel %vm787, %v1907, %v1678
    %v1924 = vsel %vm787, %v1908, %v1680
    %v1925 = vsel %vm787, %v1909, %v1682
    %v1926 = vsel %vm787, %v1910, %v1684
    %v1927 = vsel %vm787, %v1911, %v1686
    %v1928 = vsel %vm787, %v1912, %v1688
    %v1929 = vsel %vm804, %v1913, %v1706
    %v1930 = vsel %vm804, %v1914, %v1708
    %v1931 = vsel %vm804, %v1915, %v1710
    %v1932 = vsel %vm804, %v1916, %v1712
    %v1933 = vsel %vm804, %v1917, %v1714
    %v1934 = vsel %vm804, %v1918, %v1716
    %v1935 = vsel %vm804, %v1919, %v1718
    %v1936 = vsel %vm804, %v1920, %v1720
    %v1937 = vsel %vm804, %v1921, %v1722
    %v1938 = vsel %vm804, %v1922, %v1724
    %v1939 = vsel %vm804, %v1923, %v1726
    %v1940 = vsel %vm804, %v1924, %v1728
    %v1941 = vsel %vm804, %v1925, %v1730
    %v1942 = vsel %vm804, %v1926, %v1732
    %v1943 = vsel %vm804, %v1927, %v1734
    %v1944 = vsel %vm804, %v1928, %v1736
    %v1945 = vsel %vm821, %v1929, %v1754
    %v1946 = vsel %vm821, %v1930, %v1756
    %v1947 = vsel %vm821, %v1931, %v1758
    %v1948 = vsel %vm821, %v1932, %v1760
    %v1949 = vsel %vm821, %v1933, %v1762
    %v1950 = vsel %vm821, %v1934, %v1764
    %v1951 = vsel %vm821, %v1935, %v1766
    %v1952 = vsel %vm821, %v1936, %v1768
    %v1953 = vsel %vm821, %v1937, %v1770
    %v1954 = vsel %vm821, %v1938, %v1772
    %v1955 = vsel %vm821, %v1939, %v1774
    %v1956 = vsel %vm821, %v1940, %v1776
    %v1957 = vsel %vm821, %v1941, %v1778
    %v1958 = vsel %vm821, %v1942, %v1780
    %v1959 = vsel %vm821, %v1943, %v1782
    %v1960 = vsel %vm821, %v1944, %v1784
    %v1961 = vsel %vm838, %v1945, %v1802
    %v1962 = vsel %vm838, %v1946, %v1804
    %v1963 = vsel %vm838, %v1947, %v1806
    %v1964 = vsel %vm838, %v1948, %v1808
    %v1965 = vsel %vm838, %v1949, %v1810
    %v1966 = vsel %vm838, %v1950, %v1812
    %v1967 = vsel %vm838, %v1951, %v1814
    %v1968 = vsel %vm838, %v1952, %v1816
    %v1969 = vsel %vm838, %v1953, %v1818
    %v1970 = vsel %vm838, %v1954, %v1820
    %v1971 = vsel %vm838, %v1955, %v1822
    %v1972 = vsel %vm838, %v1956, %v1824
    %v1973 = vsel %vm838, %v1957, %v1826
    %v1974 = vsel %vm838, %v1958, %v1828
    %v1975 = vsel %vm838, %v1959, %v1830
    %v1976 = vsel %vm838, %v1960, %v1832
    %v1977 = vld [vmem:[%s4] sm:$0xff]
    %v1978 = vld [vmem:[%s4 + $0x8] sm:$0xff]
    %v1979 = vld [vmem:[%s4 + $0x10] sm:$0xff]
    %v1980 = vld [vmem:[%s4 + $0x18] sm:$0xff]
    %v1981 = vld [vmem:[%s4 + $0x20] sm:$0xff]
    %v1982 = vld [vmem:[%s4 + $0x28] sm:$0xff]
    %v1983 = vld [vmem:[%s4 + $0x30] sm:$0xff]
    %v1984 = vld [vmem:[%s4 + $0x38] sm:$0xff]
    %v1985 = vld [vmem:[%s4 + $0x40] sm:$0xff]
    %v1987 = vsel %vm864, %v1961, 0
    %v1990 = vsel %vm864, %v1962, 0
    %v1993 = vsel %vm864, %v1963, 0
    %v1996 = vsel %vm864, %v1964, 0
    %v1999 = vsel %vm864, %v1965, 0
    %v2002 = vsel %vm864, %v1966, 0
    %v2005 = vsel %vm864, %v1967, 0
    %v2008 = vsel %vm864, %v1968, 0
    %v2011 = vsel %vm864, %v1969, 0
    %v2014 = vsel %vm864, %v1970, 0
    %v2017 = vsel %vm864, %v1971, 0
    %v2020 = vsel %vm864, %v1972, 0
    %v2023 = vsel %vm864, %v1973, 0
    %v2026 = vsel %vm864, %v1974, 0
    %v2029 = vsel %vm864, %v1975, 0
    %v2032 = vsel %vm864, %v1976, 0
    %2034 = vmatprep.subr.mxu0 0.0
    %2035 = vmatpush1.msra.mxu0 0.0
    %2036 = vmatprep.subr.mxu0 0.0
    %2037 = vmatpush1.msra.mxu0 0.0
    %2038 = vmatprep.subr.mxu0 0.0
    %2039 = vmatpush1.msra.mxu0 0.0
    %2040 = vmatprep.subr.mxu0 0.0
    %2041 = vmatpush1.msra.mxu0 0.0
    %2042 = vmatprep.subr.mxu0 0.0
    %2043 = vmatpush1.msra.mxu0 0.0
    %2044 = vmatprep.subr.mxu0 0.0
    %2045 = vmatpush1.msra.mxu0 0.0
    %2046 = vmatprep.subr.mxu0 0.0
    %2047 = vmatpush1.msra.mxu0 0.0
    %2048 = vmatprep.subr.mxu0 0.0
    %2049 = vmatpush1.msra.mxu0 %v1985
    %2050 = vmatprep.subr.mxu0 0.0
    %2051 = vmatpush1.msra.mxu0 %v1984
    %2052 = vmatprep.subr.mxu0 0.0
    %2053 = vmatpush1.msra.mxu0 %v1983
    %2054 = vmatprep.subr.mxu0 0.0
    %2055 = vmatpush1.msra.mxu0 %v1982
    %2056 = vmatprep.subr.mxu0 0.0
    %2057 = vmatpush1.msra.mxu0 %v1981
    %2058 = vmatprep.subr.mxu0 0.0
    %2059 = vmatpush1.msra.mxu0 %v1980
    %2060 = vmatprep.subr.mxu0 0.0
    %2061 = vmatpush1.msra.mxu0 %v1979
    %2062 = vmatprep.subr.mxu0 0.0
    %2063 = vmatpush1.msra.mxu0 %v1978
    %2064 = vmatprep.subr.mxu0 0.0
    %2065 = vmatpush1.msra.mxu0 %v1977
    %2066 = vmatprep.subr.mxu0 0.0
    %2067 = vmatpush2.msra.mxu0 0.0
    %2068 = vmatprep.subr.mxu0 0.0
    %2069 = vmatpush2.msra.mxu0 0.0
    %2070 = vmatprep.subr.mxu0 0.0
    %2071 = vmatpush2.msra.mxu0 0.0
    %2072 = vmatprep.subr.mxu0 0.0
    %2073 = vmatpush2.msra.mxu0 0.0
    %2074 = vmatprep.subr.mxu0 0.0
    %2075 = vmatpush2.msra.mxu0 0.0
    %2076 = vmatprep.subr.mxu0 0.0
    %2077 = vmatpush2.msra.mxu0 0.0
    %2078 = vmatprep.subr.mxu0 0.0
    %2079 = vmatpush2.msra.mxu0 0.0
    %2080 = vmatprep.subr.mxu0 0.0
    %2081 = vmatpush2.msra.mxu0 0.0
    %2082 = vmatprep.subr.mxu0 0.0
    %2083 = vmatpush2.msra.mxu0 0.0
    %2084 = vmatprep.subr.mxu0 0.0
    %2085 = vmatpush2.msra.mxu0 0.0
    %2086 = vmatprep.subr.mxu0 0.0
    %2087 = vmatpush2.msra.mxu0 0.0
    %2088 = vmatprep.subr.mxu0 0.0
    %2089 = vmatpush2.msra.mxu0 0.0
    %2090 = vmatprep.subr.mxu0 0.0
    %2091 = vmatpush2.msra.mxu0 0.0
    %2092 = vmatprep.subr.mxu0 0.0
    %2093 = vmatpush2.msra.mxu0 0.0
    %2094 = vmatprep.subr.mxu0 0.0
    %2095 = vmatpush2.msra.mxu0 0.0
    %2096 = vmatprep.subr.mxu0 0.0
    %2097 = vmatpush2.msra.mxu0 0.0
    %2098 = vmatprep.mubr.f32.mxu0 0.0
    %2099 = vmatmul.mubr.f32.gmra.mxu0 %v1987
    %v2100 = vpop.f32.mrf.mxu0
    %v2101 = vadd.f32 0.0, %v2100
    %v2102 = vpop.f32.mrf.mxu0
    %2103 = vmatprep.mubr.f32.mxu0 0.0
    %2104 = vmatmul.mubr.f32.gmra.mxu0 %v1990
    %v2105 = vpop.f32.mrf.mxu0
    %v2106 = vadd.f32 0.0, %v2105
    %v2107 = vpop.f32.mrf.mxu0
    %2108 = vmatprep.mubr.f32.mxu0 0.0
    %2109 = vmatmul.mubr.f32.gmra.mxu0 %v1993
    %v2110 = vpop.f32.mrf.mxu0
    %v2111 = vadd.f32 0.0, %v2110
    %v2112 = vpop.f32.mrf.mxu0
    %2113 = vmatprep.mubr.f32.mxu0 0.0
    %2114 = vmatmul.mubr.f32.gmra.mxu0 %v1996
    %v2115 = vpop.f32.mrf.mxu0
    %v2116 = vadd.f32 0.0, %v2115
    %v2117 = vpop.f32.mrf.mxu0
    %2118 = vmatprep.mubr.f32.mxu0 0.0
    %2119 = vmatmul.mubr.f32.gmra.mxu0 %v1999
    %v2120 = vpop.f32.mrf.mxu0
    %v2121 = vadd.f32 0.0, %v2120
    %v2122 = vpop.f32.mrf.mxu0
    %2123 = vmatprep.mubr.f32.mxu0 0.0
    %2124 = vmatmul.mubr.f32.gmra.mxu0 %v2002
    %v2125 = vpop.f32.mrf.mxu0
    %v2126 = vadd.f32 0.0, %v2125
    %v2127 = vpop.f32.mrf.mxu0
    %2128 = vmatprep.mubr.f32.mxu0 0.0
    %2129 = vmatmul.mubr.f32.gmra.mxu0 %v2005
    %v2130 = vpop.f32.mrf.mxu0
    %v2131 = vadd.f32 0.0, %v2130
    %v2132 = vpop.f32.mrf.mxu0
    %2133 = vmatprep.mubr.f32.mxu0 0.0
    %2134 = vmatmul.mubr.f32.gmra.mxu0 %v2008
    %v2135 = vpop.f32.mrf.mxu0
    %v2136 = vadd.f32 0.0, %v2135
    %v2137 = vpop.f32.mrf.mxu0
    %2138 = vmatprep.mubr.f32.mxu0 0.0
    %2139 = vmatmul.mubr.f32.gmra.mxu0 %v2011
    %v2140 = vpop.f32.mrf.mxu0
    %v2141 = vadd.f32 0.0, %v2140
    %v2142 = vpop.f32.mrf.mxu0
    %2143 = vmatprep.mubr.f32.mxu0 0.0
    %2144 = vmatmul.mubr.f32.gmra.mxu0 %v2014
    %v2145 = vpop.f32.mrf.mxu0
    %v2146 = vadd.f32 0.0, %v2145
    %v2147 = vpop.f32.mrf.mxu0
    %2148 = vmatprep.mubr.f32.mxu0 0.0
    %2149 = vmatmul.mubr.f32.gmra.mxu0 %v2017
    %v2150 = vpop.f32.mrf.mxu0
    %v2151 = vadd.f32 0.0, %v2150
    %v2152 = vpop.f32.mrf.mxu0
    %2153 = vmatprep.mubr.f32.mxu0 0.0
    %2154 = vmatmul.mubr.f32.gmra.mxu0 %v2020
    %v2155 = vpop.f32.mrf.mxu0
    %v2156 = vadd.f32 0.0, %v2155
    %v2157 = vpop.f32.mrf.mxu0
    %2158 = vmatprep.mubr.f32.mxu0 0.0
    %2159 = vmatmul.mubr.f32.gmra.mxu0 %v2023
    %v2160 = vpop.f32.mrf.mxu0
    %v2161 = vadd.f32 0.0, %v2160
    %v2162 = vpop.f32.mrf.mxu0
    %2163 = vmatprep.mubr.f32.mxu0 0.0
    %2164 = vmatmul.mubr.f32.gmra.mxu0 %v2026
    %v2165 = vpop.f32.mrf.mxu0
    %v2166 = vadd.f32 0.0, %v2165
    %v2167 = vpop.f32.mrf.mxu0
    %2168 = vmatprep.mubr.f32.mxu0 0.0
    %2169 = vmatmul.mubr.f32.gmra.mxu0 %v2029
    %v2170 = vpop.f32.mrf.mxu0
    %v2171 = vadd.f32 0.0, %v2170
    %v2172 = vpop.f32.mrf.mxu0
    %2173 = vmatprep.mubr.f32.mxu0 0.0
    %2174 = vmatmul.mubr.f32.gmra.mxu0 %v2032
    %v2175 = vpop.f32.mrf.mxu0
    %v2176 = vadd.f32 0.0, %v2175
    %v2177 = vpop.f32.mrf.mxu0
    %2178 = vdwg.mxu0
    %v2179 = vmul.f32 %v2101, %v1061
    %v2180 = vmul.f32 %v2106, %v1066
    %v2181 = vmul.f32 %v2111, %v1071
    %v2182 = vmul.f32 %v2116, %v1076
    %v2183 = vmul.f32 %v2121, %v1081
    %v2184 = vmul.f32 %v2126, %v1086
    %v2185 = vmul.f32 %v2131, %v1091
    %v2186 = vmul.f32 %v2136, %v1096
    %v2187 = vmul.f32 %v2141, %v1101
    %v2188 = vmul.f32 %v2146, %v1106
    %v2189 = vmul.f32 %v2151, %v1111
    %v2190 = vmul.f32 %v2156, %v1116
    %v2191 = vmul.f32 %v2161, %v1121
    %v2192 = vmul.f32 %v2166, %v1126
    %v2193 = vmul.f32 %v2171, %v1131
    %v2194 = vmul.f32 %v2176, %v1136
    %v2196 = vlaneseq
    %v2197 = vshrl.u32 %v2196, 7
    %v2198 = vsub.s32 0, %v2197
    %v2199 = vrot.slane %v1208, %v2198
    %v2201 = vadd.f32 %v2179, %v2199
    %v2202 = vadd.f32 %v2180, %v2199
    %v2203 = vadd.f32 %v2181, %v2199
    %v2204 = vadd.f32 %v2182, %v2199
    %v2205 = vadd.f32 %v2183, %v2199
    %v2206 = vadd.f32 %v2184, %v2199
    %v2207 = vadd.f32 %v2185, %v2199
    %v2208 = vadd.f32 %v2186, %v2199
    %v2209 = vadd.f32 %v2187, %v2199
    %v2210 = vadd.f32 %v2188, %v2199
    %v2211 = vadd.f32 %v2189, %v2199
    %v2212 = vadd.f32 %v2190, %v2199
    %v2213 = vadd.f32 %v2191, %v2199
    %v2214 = vadd.f32 %v2192, %v2199
    %v2215 = vadd.f32 %v2193, %v2199
    %v2216 = vadd.f32 %v2194, %v2199
    %v2217 = vmul.f32 %v2201, %v1061
    %v2218 = vmul.f32 %v2202, %v1066
    %v2219 = vmul.f32 %v2203, %v1071
    %v2220 = vmul.f32 %v2204, %v1076
    %v2221 = vmul.f32 %v2205, %v1081
    %v2222 = vmul.f32 %v2206, %v1086
    %v2223 = vmul.f32 %v2207, %v1091
    %v2224 = vmul.f32 %v2208, %v1096
    %v2225 = vmul.f32 %v2209, %v1101
    %v2226 = vmul.f32 %v2210, %v1106
    %v2227 = vmul.f32 %v2211, %v1111
    %v2228 = vmul.f32 %v2212, %v1116
    %v2229 = vmul.f32 %v2213, %v1121
    %v2230 = vmul.f32 %v2214, %v1126
    %v2231 = vmul.f32 %v2215, %v1131
    %v2232 = vmul.f32 %v2216, %v1136
    %v2233 = vld [vmem:[%s10] sm:$0x1]
    %v2234 = vld [vmem:[%s10 + $0x1] sm:$0x1]
    %v2235 = vld [vmem:[%s11] sm:$0x1]
    %v2236 = vld [vmem:[%s11 + $0x1] sm:$0x1]
    %v2237 = vsel %vm75, %v2217, 0.0
    %v2238 = vsel %vm75, %v2218, 0.0
    %v2239 = vadd.f32 %v2237, %v2238
    %v2240 = vsel %vm75, %v2219, 0.0
    %v2241 = vadd.f32 %v2239, %v2240
    %v2242 = vsel %vm75, %v2220, 0.0
    %v2243 = vadd.f32 %v2241, %v2242
    %v2244 = vsel %vm75, %v2221, 0.0
    %v2245 = vadd.f32 %v2243, %v2244
    %v2246 = vsel %vm75, %v2222, 0.0
    %v2247 = vadd.f32 %v2245, %v2246
    %v2248 = vsel %vm75, %v2223, 0.0
    %v2249 = vadd.f32 %v2247, %v2248
    %v2250 = vsel %vm75, %v2224, 0.0
    %v2251 = vadd.f32 %v2249, %v2250
    %v2252 = vrot.slane %v2251, 4
    %v2253 = vadd.f32 %v2251, %v2252
    %v2254 = vrot.slane %v2253, 2
    %v2255 = vadd.f32 %v2253, %v2254
    %v2256 = vrot.slane %v2255, 1
    %v2257 = vadd.f32 %v2255, %v2256
    %v2258 = vsel %vm75, %v2225, 0.0
    %v2259 = vsel %vm75, %v2226, 0.0
    %v2260 = vadd.f32 %v2258, %v2259
    %v2261 = vsel %vm75, %v2227, 0.0
    %v2262 = vadd.f32 %v2260, %v2261
    %v2263 = vsel %vm75, %v2228, 0.0
    %v2264 = vadd.f32 %v2262, %v2263
    %v2265 = vsel %vm75, %v2229, 0.0
    %v2266 = vadd.f32 %v2264, %v2265
    %v2267 = vsel %vm75, %v2230, 0.0
    %v2268 = vadd.f32 %v2266, %v2267
    %v2269 = vsel %vm75, %v2231, 0.0
    %v2270 = vadd.f32 %v2268, %v2269
    %v2271 = vsel %vm75, %v2232, 0.0
    %v2272 = vadd.f32 %v2270, %v2271
    %v2273 = vrot.slane %v2272, 4
    %v2274 = vadd.f32 %v2272, %v2273
    %v2275 = vrot.slane %v2274, 2
    %v2276 = vadd.f32 %v2274, %v2275
    %v2277 = vrot.slane %v2276, 1
    %v2278 = vadd.f32 %v2276, %v2277
    %2280 = vset.pattern.permute.xlu0 0
    %2281 = vperm.xlu0 %2280, %v2233
    %v2282 = vpop.permute.xlu0 %2281
    %v2284 = vlaneseq
    %v2285 = vshrl.u32 %v2284, 7
    %v2286 = vsub.s32 0, %v2285
    %v2287 = vrot.slane %v2282, %v2286
    %2289 = vset.pattern.permute.xlu0 0
    %2290 = vperm.xlu0 %2289, %v2234
    %v2291 = vpop.permute.xlu0 %2290
    %v2293 = vlaneseq
    %v2294 = vshrl.u32 %v2293, 7
    %v2295 = vsub.s32 0, %v2294
    %v2296 = vrot.slane %v2291, %v2295
    %v2297 = vmul.f32 %v2257, %v2287
    %v2298 = vmul.f32 %v2278, %v2296
    %v2299 = vsub.f32 1.0, %v58
    %v2300 = vsub.f32 1.0, %v59
    %v2301 = vsub.f32 1.0, %v60
    %v2302 = vsub.f32 1.0, %v61
    %v2303 = vsub.f32 1.0, %v62
    %v2304 = vsub.f32 1.0, %v63
    %v2305 = vsub.f32 1.0, %v64
    %v2306 = vsub.f32 1.0, %v65
    %v2307 = vsub.f32 1.0, %v66
    %v2308 = vsub.f32 1.0, %v67
    %v2309 = vsub.f32 1.0, %v68
    %v2310 = vsub.f32 1.0, %v69
    %v2311 = vsub.f32 1.0, %v70
    %v2312 = vsub.f32 1.0, %v71
    %v2313 = vsub.f32 1.0, %v72
    %v2314 = vsub.f32 1.0, %v73
    %v2315 = vmul.f32 %v2299, -5000.0
    %v2316 = vmul.f32 %v2300, -5000.0
    %v2317 = vmul.f32 %v2301, -5000.0
    %v2318 = vmul.f32 %v2302, -5000.0
    %v2319 = vmul.f32 %v2303, -5000.0
    %v2320 = vmul.f32 %v2304, -5000.0
    %v2321 = vmul.f32 %v2305, -5000.0
    %v2322 = vmul.f32 %v2306, -5000.0
    %v2323 = vmul.f32 %v2307, -5000.0
    %v2324 = vmul.f32 %v2308, -5000.0
    %v2325 = vmul.f32 %v2309, -5000.0
    %v2326 = vmul.f32 %v2310, -5000.0
    %v2327 = vmul.f32 %v2311, -5000.0
    %v2328 = vmul.f32 %v2312, -5000.0
    %v2329 = vmul.f32 %v2313, -5000.0
    %v2330 = vmul.f32 %v2314, -5000.0
    %2332 = vset.pattern.permute.xlu0 0
    %2333 = vperm.xlu0 %2332, %v2315
    %v2334 = vpop.permute.xlu0 %2333
    %2337 = vset.pattern.permute.xlu0 0
    %2338 = vperm.xlu0 %2337, %v2316
    %v2339 = vpop.permute.xlu0 %2338
    %2342 = vset.pattern.permute.xlu0 0
    %2343 = vperm.xlu0 %2342, %v2317
    %v2344 = vpop.permute.xlu0 %2343
    %2347 = vset.pattern.permute.xlu0 0
    %2348 = vperm.xlu0 %2347, %v2318
    %v2349 = vpop.permute.xlu0 %2348
    %2352 = vset.pattern.permute.xlu0 0
    %2353 = vperm.xlu0 %2352, %v2319
    %v2354 = vpop.permute.xlu0 %2353
    %2357 = vset.pattern.permute.xlu0 0
    %2358 = vperm.xlu0 %2357, %v2320
    %v2359 = vpop.permute.xlu0 %2358
    %2362 = vset.pattern.permute.xlu0 0
    %2363 = vperm.xlu0 %2362, %v2321
    %v2364 = vpop.permute.xlu0 %2363
    %2367 = vset.pattern.permute.xlu0 0
    %2368 = vperm.xlu0 %2367, %v2322
    %v2369 = vpop.permute.xlu0 %2368
    %2372 = vset.pattern.permute.xlu0 0
    %2373 = vperm.xlu0 %2372, %v2323
    %v2374 = vpop.permute.xlu0 %2373
    %2377 = vset.pattern.permute.xlu0 0
    %2378 = vperm.xlu0 %2377, %v2324
    %v2379 = vpop.permute.xlu0 %2378
    %2382 = vset.pattern.permute.xlu0 0
    %2383 = vperm.xlu0 %2382, %v2325
    %v2384 = vpop.permute.xlu0 %2383
    %2387 = vset.pattern.permute.xlu0 0
    %2388 = vperm.xlu0 %2387, %v2326
    %v2389 = vpop.permute.xlu0 %2388
    %2392 = vset.pattern.permute.xlu0 0
    %2393 = vperm.xlu0 %2392, %v2327
    %v2394 = vpop.permute.xlu0 %2393
    %2397 = vset.pattern.permute.xlu0 0
    %2398 = vperm.xlu0 %2397, %v2328
    %v2399 = vpop.permute.xlu0 %2398
    %2402 = vset.pattern.permute.xlu0 0
    %2403 = vperm.xlu0 %2402, %v2329
    %v2404 = vpop.permute.xlu0 %2403
    %2407 = vset.pattern.permute.xlu0 0
    %2408 = vperm.xlu0 %2407, %v2330
    %v2409 = vpop.permute.xlu0 %2408
    %v2411 = vadd.f32 %v2217, %v2334
    %v2412 = vadd.f32 %v2218, %v2339
    %v2413 = vadd.f32 %v2219, %v2344
    %v2414 = vadd.f32 %v2220, %v2349
    %v2415 = vadd.f32 %v2221, %v2354
    %v2416 = vadd.f32 %v2222, %v2359
    %v2417 = vadd.f32 %v2223, %v2364
    %v2418 = vadd.f32 %v2224, %v2369
    %v2419 = vadd.f32 %v2225, %v2374
    %v2420 = vadd.f32 %v2226, %v2379
    %v2421 = vadd.f32 %v2227, %v2384
    %v2422 = vadd.f32 %v2228, %v2389
    %v2423 = vadd.f32 %v2229, %v2394
    %v2424 = vadd.f32 %v2230, %v2399
    %v2425 = vadd.f32 %v2231, %v2404
    %v2426 = vadd.f32 %v2232, %v2409
    %v2427 = vsel %vm75, %v2411, -inf
    %v2428 = vsel %vm75, %v2412, -inf
    %v2429 = vsel %vm75, %v2413, -inf
    %v2430 = vmax.f32 %v2427, %v2429
    %v2431 = vsel %vm75, %v2414, -inf
    %v2432 = vmax.f32 %v2428, %v2431
    %v2433 = vsel %vm75, %v2415, -inf
    %v2434 = vmax.f32 %v2430, %v2433
    %v2435 = vsel %vm75, %v2416, -inf
    %v2436 = vmax.f32 %v2432, %v2435
    %v2437 = vsel %vm75, %v2417, -inf
    %v2438 = vmax.f32 %v2434, %v2437
    %v2439 = vsel %vm75, %v2418, -inf
    %v2440 = vmax.f32 %v2436, %v2439
    %v2441 = vmax.f32 %v2438, %v2440
    %v2442 = vrot.slane %v2441, 4
    %v2443 = vmax.f32 %v2441, %v2442
    %v2444 = vrot.slane %v2443, 2
    %v2445 = vmax.f32 %v2443, %v2444
    %v2446 = vrot.slane %v2445, 1
    %v2447 = vmax.f32 %v2445, %v2446
    %v2448 = vsel %vm75, %v2419, -inf
    %v2449 = vsel %vm75, %v2420, -inf
    %v2450 = vsel %vm75, %v2421, -inf
    %v2451 = vmax.f32 %v2448, %v2450
    %v2452 = vsel %vm75, %v2422, -inf
    %v2453 = vmax.f32 %v2449, %v2452
    %v2454 = vsel %vm75, %v2423, -inf
    %v2455 = vmax.f32 %v2451, %v2454
    %v2456 = vsel %vm75, %v2424, -inf
    %v2457 = vmax.f32 %v2453, %v2456
    %v2458 = vsel %vm75, %v2425, -inf
    %v2459 = vmax.f32 %v2455, %v2458
    %v2460 = vsel %vm75, %v2426, -inf
    %v2461 = vmax.f32 %v2457, %v2460
    %v2462 = vmax.f32 %v2459, %v2461
    %v2463 = vrot.slane %v2462, 4
    %v2464 = vmax.f32 %v2462, %v2463
    %v2465 = vrot.slane %v2464, 2
    %v2466 = vmax.f32 %v2464, %v2465
    %v2467 = vrot.slane %v2466, 1
    %v2468 = vmax.f32 %v2466, %v2467
    %2470 = vset.pattern.permute.xlu0 0
    %2471 = vperm.xlu0 %2470, %v2235
    %v2472 = vpop.permute.xlu0 %2471
    %v2474 = vlaneseq
    %v2475 = vshrl.u32 %v2474, 7
    %v2476 = vsub.s32 0, %v2475
    %v2477 = vrot.slane %v2472, %v2476
    %2479 = vset.pattern.permute.xlu0 0
    %2480 = vperm.xlu0 %2479, %v2236
    %v2481 = vpop.permute.xlu0 %2480
    %v2483 = vlaneseq
    %v2484 = vshrl.u32 %v2483, 7
    %v2485 = vsub.s32 0, %v2484
    %v2486 = vrot.slane %v2481, %v2485
    %v2487 = vmul.f32 %v2297, %v2477
    %v2488 = vmul.f32 %v2298, %v2486
    %v2491 = vrot.slane %v2298, 7
    %vm2492 = vcmask 1041409
    %v2493 = vsel %vm2492, %v2491, %v2297
    %v2497 = vrot.slane %v2488, 7
    %v2498 = vsel %vm2492, %v2497, %v2487
    %2499 = vrot.lane.b32.xlu0 %v2498, 8
    %v2500 = vpop.permute.xlu0 %2499
    %v2504 = vsel %vm2492, %v2468, %v2447
    %2505 = vrot.lane.b32.xlu0 %v2504, 16
    %v2506 = vpop.permute.xlu0 %2505
    %v2508 = vsel %vm75, %v2493, %v2500
    %v2509 = vsel %vm736, %v2508, %v2506
    %v2510 = vld [vmem:[%s6] sm:$0xff]
    %v2511 = vld [vmem:[%s6 + $0x8] sm:$0xff]
    %v2512 = vld [vmem:[%s6 + $0x10] sm:$0xff]
    %v2513 = vld [vmem:[%s7] sm:$0x1]
    %v2515 = vlaneseq
    %v2516 = vshrl.u32 %v2515, 7
    %v2517 = vsub.s32 0, %v2516
    %v2518 = vrot.slane %v2513, %v2517
    %v2521 = vsel %vm753, %v2509, 0
    %2523 = vmatprep.subr.mxu0 0.0
    %2524 = vmatpush1.msra.mxu0 0.0
    %2525 = vmatprep.subr.mxu0 0.0
    %2526 = vmatpush1.msra.mxu0 0.0
    %2527 = vmatprep.subr.mxu0 0.0
    %2528 = vmatpush1.msra.mxu0 0.0
    %2529 = vmatprep.subr.mxu0 0.0
    %2530 = vmatpush1.msra.mxu0 0.0
    %2531 = vmatprep.subr.mxu0 0.0
    %2532 = vmatpush1.msra.mxu0 0.0
    %2533 = vmatprep.subr.mxu0 0.0
    %2534 = vmatpush1.msra.mxu0 0.0
    %2535 = vmatprep.subr.mxu0 0.0
    %2536 = vmatpush1.msra.mxu0 0.0
    %2537 = vmatprep.subr.mxu0 0.0
    %2538 = vmatpush1.msra.mxu0 0.0
    %2539 = vmatprep.subr.mxu0 0.0
    %2540 = vmatpush1.msra.mxu0 0.0
    %2541 = vmatprep.subr.mxu0 0.0
    %2542 = vmatpush1.msra.mxu0 0.0
    %2543 = vmatprep.subr.mxu0 0.0
    %2544 = vmatpush1.msra.mxu0 0.0
    %2545 = vmatprep.subr.mxu0 0.0
    %2546 = vmatpush1.msra.mxu0 0.0
    %2547 = vmatprep.subr.mxu0 0.0
    %2548 = vmatpush1.msra.mxu0 0.0
    %2549 = vmatprep.subr.mxu0 0.0
    %2550 = vmatpush1.msra.mxu0 %v2512
    %2551 = vmatprep.subr.mxu0 0.0
    %2552 = vmatpush1.msra.mxu0 %v2511
    %2553 = vmatprep.subr.mxu0 0.0
    %2554 = vmatpush1.msra.mxu0 %v2510
    %2555 = vmatprep.subr.mxu0 0.0
    %2556 = vmatpush2.msra.mxu0 0.0
    %2557 = vmatprep.subr.mxu0 0.0
    %2558 = vmatpush2.msra.mxu0 0.0
    %2559 = vmatprep.subr.mxu0 0.0
    %2560 = vmatpush2.msra.mxu0 0.0
    %2561 = vmatprep.subr.mxu0 0.0
    %2562 = vmatpush2.msra.mxu0 0.0
    %2563 = vmatprep.subr.mxu0 0.0
    %2564 = vmatpush2.msra.mxu0 0.0
    %2565 = vmatprep.subr.mxu0 0.0
    %2566 = vmatpush2.msra.mxu0 0.0
    %2567 = vmatprep.subr.mxu0 0.0
    %2568 = vmatpush2.msra.mxu0 0.0
    %2569 = vmatprep.subr.mxu0 0.0
    %2570 = vmatpush2.msra.mxu0 0.0
    %2571 = vmatprep.subr.mxu0 0.0
    %2572 = vmatpush2.msra.mxu0 0.0
    %2573 = vmatprep.subr.mxu0 0.0
    %2574 = vmatpush2.msra.mxu0 0.0
    %2575 = vmatprep.subr.mxu0 0.0
    %2576 = vmatpush2.msra.mxu0 0.0
    %2577 = vmatprep.subr.mxu0 0.0
    %2578 = vmatpush2.msra.mxu0 0.0
    %2579 = vmatprep.subr.mxu0 0.0
    %2580 = vmatpush2.msra.mxu0 0.0
    %2581 = vmatprep.subr.mxu0 0.0
    %2582 = vmatpush2.msra.mxu0 0.0
    %2583 = vmatprep.subr.mxu0 0.0
    %2584 = vmatpush2.msra.mxu0 0.0
    %2585 = vmatprep.subr.mxu0 0.0
    %2586 = vmatpush2.msra.mxu0 0.0
    %2587 = vmatprep.mubr.f32.mxu0 0.0
    %2588 = vmatmul.mubr.f32.gmra.mxu0 %v2521
    %v2589 = vpop.f32.mrf.mxu0
    %v2590 = vadd.f32 %v2518, %v2589
    %v2591 = vpop.f32.mrf.mxu0
    %2592 = vdwg.mxu0
    %v2593 = vmax.f32 %v2590, 0.0
    %v2594 = vld [vmem:[%s8] sm:$0xff]
    %v2595 = vld [vmem:[%s9] sm:$0x1]
    %v2597 = vlaneseq
    %v2598 = vshrl.u32 %v2597, 7
    %v2599 = vsub.s32 0, %v2598
    %v2600 = vrot.slane %v2595, %v2599
    %v2603 = vsel %vm75, %v2593, 0
    %2605 = vmatprep.subr.mxu0 0.0
    %2606 = vmatpush1.msra.mxu0 0.0
    %2607 = vmatprep.subr.mxu0 0.0
    %2608 = vmatpush1.msra.mxu0 0.0
    %2609 = vmatprep.subr.mxu0 0.0
    %2610 = vmatpush1.msra.mxu0 0.0
    %2611 = vmatprep.subr.mxu0 0.0
    %2612 = vmatpush1.msra.mxu0 0.0
    %2613 = vmatprep.subr.mxu0 0.0
    %2614 = vmatpush1.msra.mxu0 0.0
    %2615 = vmatprep.subr.mxu0 0.0
    %2616 = vmatpush1.msra.mxu0 0.0
    %2617 = vmatprep.subr.mxu0 0.0
    %2618 = vmatpush1.msra.mxu0 0.0
    %2619 = vmatprep.subr.mxu0 0.0
    %2620 = vmatpush1.msra.mxu0 0.0
    %2621 = vmatprep.subr.mxu0 0.0
    %2622 = vmatpush1.msra.mxu0 0.0
    %2623 = vmatprep.subr.mxu0 0.0
    %2624 = vmatpush1.msra.mxu0 0.0
    %2625 = vmatprep.subr.mxu0 0.0
    %2626 = vmatpush1.msra.mxu0 0.0
    %2627 = vmatprep.subr.mxu0 0.0
    %2628 = vmatpush1.msra.mxu0 0.0
    %2629 = vmatprep.subr.mxu0 0.0
    %2630 = vmatpush1.msra.mxu0 0.0
    %2631 = vmatprep.subr.mxu0 0.0
    %2632 = vmatpush1.msra.mxu0 0.0
    %2633 = vmatprep.subr.mxu0 0.0
    %2634 = vmatpush1.msra.mxu0 0.0
    %2635 = vmatprep.subr.mxu0 0.0
    %2636 = vmatpush1.msra.mxu0 %v2594
    %2637 = vmatprep.subr.mxu0 0.0
    %2638 = vmatpush2.msra.mxu0 0.0
    %2639 = vmatprep.subr.mxu0 0.0
    %2640 = vmatpush2.msra.mxu0 0.0
    %2641 = vmatprep.subr.mxu0 0.0
    %2642 = vmatpush2.msra.mxu0 0.0
    %2643 = vmatprep.subr.mxu0 0.0
    %2644 = vmatpush2.msra.mxu0 0.0
    %2645 = vmatprep.subr.mxu0 0.0
    %2646 = vmatpush2.msra.mxu0 0.0
    %2647 = vmatprep.subr.mxu0 0.0
    %2648 = vmatpush2.msra.mxu0 0.0
    %2649 = vmatprep.subr.mxu0 0.0
    %2650 = vmatpush2.msra.mxu0 0.0
    %2651 = vmatprep.subr.mxu0 0.0
    %2652 = vmatpush2.msra.mxu0 0.0
    %2653 = vmatprep.subr.mxu0 0.0
    %2654 = vmatpush2.msra.mxu0 0.0
    %2655 = vmatprep.subr.mxu0 0.0
    %2656 = vmatpush2.msra.mxu0 0.0
    %2657 = vmatprep.subr.mxu0 0.0
    %2658 = vmatpush2.msra.mxu0 0.0
    %2659 = vmatprep.subr.mxu0 0.0
    %2660 = vmatpush2.msra.mxu0 0.0
    %2661 = vmatprep.subr.mxu0 0.0
    %2662 = vmatpush2.msra.mxu0 0.0
    %2663 = vmatprep.subr.mxu0 0.0
    %2664 = vmatpush2.msra.mxu0 0.0
    %2665 = vmatprep.subr.mxu0 0.0
    %2666 = vmatpush2.msra.mxu0 0.0
    %2667 = vmatprep.subr.mxu0 0.0
    %2668 = vmatpush2.msra.mxu0 0.0
    %2669 = vmatprep.mubr.f32.mxu0 0.0
    %2670 = vmatmul.mubr.f32.gmra.mxu0 %v2603
    %v2671 = vpop.f32.mrf.mxu0
    %v2672 = vadd.f32 %v2600, %v2671
    %v2673 = vpop.f32.mrf.mxu0
    %2674 = vdwg.mxu0
    %v2675 = vxor.u32 %v2672, 2147483648
    %v2676 = vmul.f32 %v2675, 1.442695
    %v2677 = vpow.pop %v2676
    %v2678 = vadd.f32 %v2677, 1.0
    %v2679 = vrcp.pop %v2678
    %v2680 = vmul.f32 1.0, %v2679
    %v2683 = vunpack.c.l.s4 1966171168
    %v2684 = vunpack.c.0.s8 %v2683
    %v2685 = vlaneseq
    %v2686 = vshrl.u32 %v2685, 7
    %v2687 = vsub.s32 %v2684, %v2686
    %v2688 = vrot.slane %v2680, %v2687
    %v2689 = vcombine.high %v2688, %v2688
    %v2691 = vunpack.c.l.s4 1966171168
    %v2692 = vunpack.c.0.s8 %v2691
    %v2693 = vlaneseq
    %v2694 = vshrl.u32 %v2693, 7
    %v2695 = vsub.s32 %v2692, %v2694
    %v2696 = vrot.slane %v2688, %v2695
    %v2698 = vunpack.c.l.s4 1966171168
    %v2699 = vunpack.c.0.s8 %v2698
    %v2700 = vlaneseq
    %v2701 = vshrl.u32 %v2700, 7
    %v2702 = vsub.s32 %v2699, %v2701
    %v2703 = vrot.slane %v2689, %v2702
    %v2706 = vunpack.c.l.s4 1966171168
    %v2707 = vunpack.c.0.s8 %v2706
    %v2708 = vlaneseq
    %v2709 = vshrl.u32 %v2708, 7
    %v2710 = vsub.s32 %v2707, %v2709
    %v2711 = vrot.slane %v2672, %v2710
    %v2712 = vcombine.high %v2711, %v2711
    %v2714 = vunpack.c.l.s4 1966171168
    %v2715 = vunpack.c.0.s8 %v2714
    %v2716 = vlaneseq
    %v2717 = vshrl.u32 %v2716, 7
    %v2718 = vsub.s32 %v2715, %v2717
    %v2719 = vrot.slane %v2711, %v2718
    %v2721 = vunpack.c.l.s4 1966171168
    %v2722 = vunpack.c.0.s8 %v2721
    %v2723 = vlaneseq
    %v2724 = vshrl.u32 %v2723, 7
    %v2725 = vsub.s32 %v2722, %v2724
    %v2726 = vrot.slane %v2712, %v2725
    %v2727 = vlaneseq
    %v2728 = vshrl.u32 %v2727, 7
    %v2729 = vsub.s32 0, %v2728
    %v2730 = vrot.slane %v2696, %v2729
    %v2731 = vlaneseq
    %v2732 = vshrl.u32 %v2731, 7
    %v2733 = vsub.s32 0, %v2732
    %v2734 = vrot.slane %v2703, %v2733
    %v2737 = vmul.f32 %v2730, %v2217
    %v2738 = vmul.f32 %v2730, %v2218
    %v2739 = vmul.f32 %v2730, %v2219
    %v2740 = vmul.f32 %v2730, %v2220
    %v2741 = vmul.f32 %v2730, %v2221
    %v2742 = vmul.f32 %v2730, %v2222
    %v2743 = vmul.f32 %v2730, %v2223
    %v2744 = vmul.f32 %v2730, %v2224
    %v2745 = vmul.f32 %v2734, %v2225
    %v2746 = vmul.f32 %v2734, %v2226
    %v2747 = vmul.f32 %v2734, %v2227
    %v2748 = vmul.f32 %v2734, %v2228
    %v2749 = vmul.f32 %v2734, %v2229
    %v2750 = vmul.f32 %v2734, %v2230
    %v2751 = vmul.f32 %v2734, %v2231
    %v2752 = vmul.f32 %v2734, %v2232
    %v2753 = vlaneseq
    %v2754 = vshrl.u32 %v2753, 7
    %v2755 = vsub.s32 0, %v2754
    %v2756 = vrot.slane %v2719, %v2755
    %v2757 = vlaneseq
    %v2758 = vshrl.u32 %v2757, 7
    %v2759 = vsub.s32 0, %v2758
    %v2760 = vrot.slane %v2726, %v2759
    %2761 = vrot.lane.b32.xlu0 %v2756, 120
    %v2762 = vpop.permute.xlu0 %2761
    %2763 = vrot.lane.b32.xlu0 %v2760, 120
    %v2764 = vpop.permute.xlu0 %2763
    %v2767 = vadd.f32 %v2737, %v2762
    %v2768 = vadd.f32 %v2738, %v2762
    %v2769 = vadd.f32 %v2739, %v2762
    %v2770 = vadd.f32 %v2740, %v2762
    %v2771 = vadd.f32 %v2741, %v2762
    %v2772 = vadd.f32 %v2742, %v2762
    %v2773 = vadd.f32 %v2743, %v2762
    %v2774 = vadd.f32 %v2744, %v2762
    %v2775 = vadd.f32 %v2745, %v2764
    %v2776 = vadd.f32 %v2746, %v2764
    %v2777 = vadd.f32 %v2747, %v2764
    %v2778 = vadd.f32 %v2748, %v2764
    %v2779 = vadd.f32 %v2749, %v2764
    %v2780 = vadd.f32 %v2750, %v2764
    %v2781 = vadd.f32 %v2751, %v2764
    %v2782 = vadd.f32 %v2752, %v2764
    %v2783 = vadd.f32 %v2767, %v42
    %v2784 = vadd.f32 %v2768, %v43
    %v2785 = vadd.f32 %v2769, %v44
    %v2786 = vadd.f32 %v2770, %v45
    %v2787 = vadd.f32 %v2771, %v46
    %v2788 = vadd.f32 %v2772, %v47
    %v2789 = vadd.f32 %v2773, %v48
    %v2790 = vadd.f32 %v2774, %v49
    %v2791 = vadd.f32 %v2775, %v50
    %v2792 = vadd.f32 %v2776, %v51
    %v2793 = vadd.f32 %v2777, %v52
    %v2794 = vadd.f32 %v2778, %v53
    %v2795 = vadd.f32 %v2779, %v54
    %v2796 = vadd.f32 %v2780, %v55
    %v2797 = vadd.f32 %v2781, %v56
    %v2798 = vadd.f32 %v2782, %v57
    %v2799 = vmul.f32 %v2783, %v1061
    %v2800 = vmul.f32 %v2784, %v1066
    %v2801 = vmul.f32 %v2785, %v1071
    %v2802 = vmul.f32 %v2786, %v1076
    %v2803 = vmul.f32 %v2787, %v1081
    %v2804 = vmul.f32 %v2788, %v1086
    %v2805 = vmul.f32 %v2789, %v1091
    %v2806 = vmul.f32 %v2790, %v1096
    %v2807 = vmul.f32 %v2791, %v1101
    %v2808 = vmul.f32 %v2792, %v1106
    %v2809 = vmul.f32 %v2793, %v1111
    %v2810 = vmul.f32 %v2794, %v1116
    %v2811 = vmul.f32 %v2795, %v1121
    %v2812 = vmul.f32 %v2796, %v1126
    %v2813 = vmul.f32 %v2797, %v1131
    %v2814 = vmul.f32 %v2798, %v1136
    %v2815 = vmax.f32 %v2799, 0.0
    %v2816 = vmax.f32 %v2800, 0.0
    %v2817 = vmax.f32 %v2801, 0.0
    %v2818 = vmax.f32 %v2802, 0.0
    %v2819 = vmax.f32 %v2803, 0.0
    %v2820 = vmax.f32 %v2804, 0.0
    %v2821 = vmax.f32 %v2805, 0.0
    %v2822 = vmax.f32 %v2806, 0.0
    %v2823 = vmax.f32 %v2807, 0.0
    %v2824 = vmax.f32 %v2808, 0.0
    %v2825 = vmax.f32 %v2809, 0.0
    %v2826 = vmax.f32 %v2810, 0.0
    %v2827 = vmax.f32 %v2811, 0.0
    %v2828 = vmax.f32 %v2812, 0.0
    %v2829 = vmax.f32 %v2813, 0.0
    %v2830 = vmax.f32 %v2814, 0.0
    %2831 = vst.msk [vmem:[#allocation3] sm:$0xff] %vm75, %v2815
    %2832 = vst.msk [vmem:[#allocation3 + $0x8] sm:$0xff] %vm75, %v2816
    %2833 = vst.msk [vmem:[#allocation3 + $0x10] sm:$0xff] %vm75, %v2817
    %2834 = vst.msk [vmem:[#allocation3 + $0x18] sm:$0xff] %vm75, %v2818
    %2835 = vst.msk [vmem:[#allocation3 + $0x20] sm:$0xff] %vm75, %v2819
    %2836 = vst.msk [vmem:[#allocation3 + $0x28] sm:$0xff] %vm75, %v2820
    %2837 = vst.msk [vmem:[#allocation3 + $0x30] sm:$0xff] %vm75, %v2821
    %2838 = vst.msk [vmem:[#allocation3 + $0x38] sm:$0xff] %vm75, %v2822
    %2839 = vst.msk [vmem:[#allocation3 + $0x40] sm:$0xff] %vm75, %v2823
    %2840 = vst.msk [vmem:[#allocation3 + $0x48] sm:$0xff] %vm75, %v2824
    %2841 = vst.msk [vmem:[#allocation3 + $0x50] sm:$0xff] %vm75, %v2825
    %2842 = vst.msk [vmem:[#allocation3 + $0x58] sm:$0xff] %vm75, %v2826
    %2843 = vst.msk [vmem:[#allocation3 + $0x60] sm:$0xff] %vm75, %v2827
    %2844 = vst.msk [vmem:[#allocation3 + $0x68] sm:$0xff] %vm75, %v2828
    %2845 = vst.msk [vmem:[#allocation3 + $0x70] sm:$0xff] %vm75, %v2829
    %2846 = vst.msk [vmem:[#allocation3 + $0x78] sm:$0xff] %vm75, %v2830
    // Predicated region
    $region50: #{tpu_custom_call.1} parent=1 // pred_check
      _
    $region51: #{tpu_custom_call.1} parent=1 // pred_check_branch
      %2848 = sbr.rel (0) target = $region53
    $region52: #{tpu_custom_call.1} parent=1 // pred_region
      %s2850 = ssub.s32 2048, 2048
      %2851 = vsyncadd [#allocation4], %s2850
      %s2852 = sshll.u32 [#allocation3], 4
      %s2853 = int_to_ptr.vmem [resolvable:$true] %s2852
      %2858 = dma.vmem_to_hbm [thread:$0]  %s2853, 2048, %s12, [#allocation4], 128, 128, 8
    $region53: #{tpu_custom_call.1} parent=1 // pred_fallthru
      _
    // Predicated region
    $region54: #{tpu_custom_call.1} parent=1 // pred_check
      _
    $region55: #{tpu_custom_call.1} parent=1 // pred_check_branch
      %2860 = sbr.rel (0) target = $region57
    $region56: #{tpu_custom_call.1} parent=1 // pred_region
      %2861 = dma.done [#allocation4], 2048
    $region57: #{tpu_custom_call.1} parent=1 // pred_fallthru
      _
    %2862 = vsyncpa [#allocation4], 1

</llo_original>
